<compile_context>
chip_gen: v6e
topology: v6e:2x2x1
jax: 0.10.0
libtpu: 0.0.40
codegen_flags: <defaults>
</compile_context>

<pallas_src>
import functools
import math

import jax
import jax.numpy as jnp
from jax.experimental import pallas as pl
from jax.experimental.pallas import tpu as pltpu


# ---------------------------------------------------------------------------
# In-kernel helpers (traced inside the Pallas body)
# ---------------------------------------------------------------------------
def _layernorm(x, w, b, eps=1e-5):
    # PyTorch nn.LayerNorm: biased variance over the last dim, affine.
    # Centered two-pass variance (more stable than E[x^2]-E[x]^2 when the
    # residual stream drifts), still only two XLU lane reductions.
    mu = jnp.mean(x, axis=-1, keepdims=True)
    xc = x - mu
    var = jnp.mean(xc * xc, axis=-1, keepdims=True)
    return xc * jax.lax.rsqrt(var + eps) * w + b


def _mlp(x_f32, w_fc, b_fc, w_proj, b_proj, approximate):
    # bf16 MXU inputs, f32 accumulation; elementwise path (bias, GELU) stays f32.
    h = jnp.dot(x_f32.astype(jnp.bfloat16), w_fc,
                preferred_element_type=jnp.float32) + b_fc
    # approximate=True routes the transcendental through the EUP tanh path
    # (VALU is the binding elementwise unit at these contraction sizes).
    # NOTE: deviates slightly from nn.GELU()'s exact-erf default; use
    # gelu_approximate=False for bit-level parity with the PyTorch module.
    h = jax.nn.gelu(h, approximate=approximate)
    h = jnp.dot(h.astype(jnp.bfloat16), w_proj,
                preferred_element_type=jnp.float32) + b_proj
    return h  # dropout == identity in eval


# ---------------------------------------------------------------------------
# Fused forward kernel: first_layer -> num_blocks x (LN+MLP residual x2) -> head
# ---------------------------------------------------------------------------
def custom_network_kernel(
    x_ref,                          # [tile_m, input_dim]  (bf16)
    fw_ref, fb_ref,                 # first_layer: [input_dim, n_embd] bf16, [1, n_embd] f32
    ln1w_ref, ln1b_ref,             # [num_blocks, 1, n_embd] f32
    fc1w_ref, fc1b_ref,             # [num_blocks, n_embd, 4*n_embd] bf16, [num_blocks, 1, 4*n_embd] f32
    pr1w_ref, pr1b_ref,             # [num_blocks, 4*n_embd, n_embd] bf16, [num_blocks, 1, n_embd] f32
    ln2w_ref, ln2b_ref,
    fc2w_ref, fc2b_ref,
    pr2w_ref, pr2b_ref,
    outw_ref,                       # [1, n_embd] f32 (head weight as a row)
    o_ref,                          # [1, tile_m]  (lane-dense output row)
    *, num_blocks, gelu_approximate,
):
    x = x_ref[...]

    # first_layer (bf16 x bf16 -> f32)
    h = jnp.dot(x, fw_ref[...], preferred_element_type=jnp.float32) + fb_ref[...]

    # transformer-style MLP blocks (static unroll over num_blocks)
    # TODO(synk): switch to lax.fori_loop with dynamic leading-axis ref indexing
    # (fc1w_ref[blk], ...) if bundle dumps show vreg spills at larger num_blocks.
    for blk in range(num_blocks):
        h = h + _mlp(
            _layernorm(h, ln1w_ref[blk], ln1b_ref[blk]),
            fc1w_ref[blk], fc1b_ref[blk], pr1w_ref[blk], pr1b_ref[blk],
            gelu_approximate,
        )
        h = h + _mlp(
            _layernorm(h, ln2w_ref[blk], ln2b_ref[blk]),
            fc2w_ref[blk], fc2b_ref[blk], pr2w_ref[blk], pr2b_ref[blk],
            gelu_approximate,
        )

    # Head (out_features == 1): VPU multiply + lane reduction instead of an MXU
    # pass that would produce a single result column; store a lane-dense row.
    logits = jnp.sum(h * outw_ref[...], axis=-1)      # [tile_m]
    o_ref[...] = logits[None, :]                      # [1, tile_m]


# ---------------------------------------------------------------------------
# Per-generation VMEM budget / TensorCore count
# ---------------------------------------------------------------------------
def _tpu_vmem_and_cores():
    """Returns (vmem_limit_bytes to request, TensorCores per chip)."""
    phys = None
    try:
        info = pltpu.get_tpu_info()
        phys = getattr(info, "vmem_capacity_bytes", None)
    except Exception:
        phys = None
    kind = ""
    try:
        kind = jax.devices()[0].device_kind.lower()
    except Exception:
        kind = ""
    is_v7 = ("v7" in kind) or ("7x" in kind)
    if not phys:
        phys = (64 << 20) if is_v7 else (128 << 20)
    num_tc = 2 if is_v7 else 1            # v5e/v6e: 1 TC; v7x: 2 TCs share the grid
    budget = int(phys * 0.85)             # leave headroom for compiler scratch
    budget = min(budget, (56 << 20) if is_v7 else (110 << 20))
    return budget, num_tc


def _pick_tile_m(n, input_dim, n_embd, num_blocks, vmem_budget, num_tc):
    """VMEM-aware row tile.

    Single full-batch tile on 1-TC chips when it fits; >=2 lane-aligned tiles
    on v7x so the 'parallel' grid axis can shard across both TensorCores.
    """
    # Resident single-buffered bf16 matmul weights + f32 bias/LN rows.
    weight_bytes = 2 * (input_dim * n_embd + 16 * num_blocks * n_embd * n_embd)
    aux_bytes = 4 * n_embd * (2 + 14 * num_blocks)
    headroom = 4 << 20
    avail = vmem_budget - weight_bytes - aux_bytes - headroom
    # Live f32 activations per row: h (4*n_embd B) + 4*n_embd hidden (16*n_embd B),
    # plus double-buffered bf16 x tile and f32 output row; 1.5x slack for temps.
    per_row = 20 * n_embd + 4 * input_dim + 8
    max_rows = int(avail // int(per_row * 1.5)) if avail > 0 else 0

    if n % 128 != 0 or n <= 128:
        # Full-array single block (no (8,128) tile constraint applies).
        # TODO(synk): pad the batch to a multiple of 128 if such a batch ever
        # overflows the activation budget.
        return n

    divisors = [t for t in range(128, n + 1, 128) if n % t == 0]
    fits = [t for t in divisors if t <= max(max_rows, 128)]
    if not fits:
        fits = [divisors[0]]
    if num_tc >= 2:
        multi = [t for t in fits if n // t >= 2]   # keep >=2 steps for 2-TC sharding
        if multi:
            return max(multi)
    return max(fits)


# ---------------------------------------------------------------------------
# Host-side wrapper
# ---------------------------------------------------------------------------
def preprocess_params(params):
    """One-time weight cast/reshape (hoisted out of the per-call path)."""
    bf16, f32 = jnp.bfloat16, jnp.float32

    def row(v):                      # (n,) -> (1, n): explicit lane-major layout
        return v.reshape(1, -1).astype(f32)

    def rows(v):                     # (nb, n) -> (nb, 1, n)
        return v.reshape(v.shape[0], 1, v.shape[1]).astype(f32)

    n_embd = params["fw"].shape[1]
    return (
        params["fw"].astype(bf16), row(params["fb"]),
        rows(params["ln1w"]), rows(params["ln1b"]),
        params["fc1w"].astype(bf16), rows(params["fc1b"]),
        params["pr1w"].astype(bf16), rows(params["pr1b"]),
        rows(params["ln2w"]), rows(params["ln2b"]),
        params["fc2w"].astype(bf16), rows(params["fc2b"]),
        params["pr2w"].astype(bf16), rows(params["pr2b"]),
        params["outw"].reshape(1, n_embd).astype(f32),
    )


def _full_spec(arr):
    """Whole (grid-invariant) parameter resident in VMEM, single-buffered."""
    nd = arr.ndim
    idx = lambda i, _nd=nd: (0,) * _nd
    try:
        return pl.BlockSpec(arr.shape, idx, pipeline_mode=pl.Buffered(1))
    except TypeError:   # older BlockSpec without pipeline_mode: fall back to default
        return pl.BlockSpec(arr.shape, idx)


def custom_network_forward(x, weight_args, *, num_blocks, tile_m=None,
                           gelu_approximate=True):
    """x: [N, input_dim] float32; weight_args: output of preprocess_params.
    Returns logits [N] float32."""
    N, input_dim = x.shape
    n_embd = weight_args[0].shape[1]

    vmem_budget, num_tc = _tpu_vmem_and_cores()
    if tile_m is None:
        tile_m = _pick_tile_m(N, input_dim, n_embd, num_blocks, vmem_budget, num_tc)
    assert N % tile_m == 0, "batch must be divisible by the row tile"
    num_tiles = N // tile_m
    if num_tiles > 1:
        assert tile_m % 128 == 0, (
            "multi-tile runs need a lane-aligned (multiple-of-128) row tile")

    in_specs = [pl.BlockSpec((tile_m, input_dim), lambda i: (i, 0))]
    in_specs += [_full_spec(w) for w in weight_args]

    # TODO(synk): when resident bf16 weights (~num_blocks*16*n_embd^2*2 B) near
    # ~40 MiB, add an 'arbitrary' block-index grid axis and stream per-block
    # weights (double-buffered) with h carried in a VMEM scratch accumulator.
    out = pl.pallas_call(
        functools.partial(custom_network_kernel, num_blocks=num_blocks,
                          gelu_approximate=gelu_approximate),
        out_shape=jax.ShapeDtypeStruct((1, N), jnp.float32),   # lane-dense row
        grid_spec=pltpu.PrefetchScalarGridSpec(
            num_scalar_prefetch=0,
            grid=(num_tiles,),
            in_specs=in_specs,
            out_specs=pl.BlockSpec((1, tile_m), lambda i: (0, i)),
        ),
        compiler_params=pltpu.CompilerParams(
            dimension_semantics=("parallel",),
            vmem_limit_bytes=vmem_budget,
        ),
    )(x.astype(jnp.bfloat16), *weight_args)
    return out[0]  # [N]


# ---------------------------------------------------------------------------
# Deterministic parameter construction + pure-JAX (f32) reference
# ---------------------------------------------------------------------------
def make_params(key, input_dim, n_embd, num_blocks):
    keys = iter(jax.random.split(key, 64))

    def lin(kin, kout):  # already transposed: [in, out]
        bound = 1.0 / math.sqrt(kin)
        return jax.random.uniform(next(keys), (kin, kout), jnp.float32, -bound, bound)

    def bias(kin, kout):
        bound = 1.0 / math.sqrt(kin)
        return jax.random.uniform(next(keys), (kout,), jnp.float32, -bound, bound)

    hid = 4 * n_embd
    return {
        "fw": lin(input_dim, n_embd), "fb": bias(input_dim, n_embd),
        "ln1w": jnp.ones((num_blocks, n_embd), jnp.float32),
        "ln1b": jnp.zeros((num_blocks, n_embd), jnp.float32),
        "fc1w": jnp.stack([lin(n_embd, hid) for _ in range(num_blocks)]),
        "fc1b": jnp.stack([bias(n_embd, hid) for _ in range(num_blocks)]),
        "pr1w": jnp.stack([lin(hid, n_embd) for _ in range(num_blocks)]),
        "pr1b": jnp.stack([bias(hid, n_embd) for _ in range(num_blocks)]),
        "ln2w": jnp.ones((num_blocks, n_embd), jnp.float32),
        "ln2b": jnp.zeros((num_blocks, n_embd), jnp.float32),
        "fc2w": jnp.stack([lin(n_embd, hid) for _ in range(num_blocks)]),
        "fc2b": jnp.stack([bias(n_embd, hid) for _ in range(num_blocks)]),
        "pr2w": jnp.stack([lin(hid, n_embd) for _ in range(num_blocks)]),
        "pr2b": jnp.stack([bias(hid, n_embd) for _ in range(num_blocks)]),
        "outw": lin(n_embd, 1),
    }


def reference_forward(x, p, num_blocks):
    def ln(h, w, b):
        mu = jnp.mean(h, -1, keepdims=True)
        var = jnp.mean((h - mu) ** 2, -1, keepdims=True)
        return (h - mu) / jnp.sqrt(var + 1e-5) * w + b

    def mlp(h, wf, bf, wp, bp):
        return jax.nn.gelu(h @ wf + bf, approximate=False) @ wp + bp

    h = x @ p["fw"] + p["fb"]
    for i in range(num_blocks):
        h = h + mlp(ln(h, p["ln1w"][i], p["ln1b"][i]),
                    p["fc1w"][i], p["fc1b"][i], p["pr1w"][i], p["pr1b"][i])
        h = h + mlp(ln(h, p["ln2w"][i], p["ln2b"][i]),
                    p["fc2w"][i], p["fc2b"][i], p["pr2w"][i], p["pr2b"][i])
    return (h @ p["outw"])[:, 0]


if __name__ == "__main__":
    # config: input_dim=16, n_embd=32, num_blocks=2, bias=True, dropout=0.0
    # NOTE: at this toy shape the kernel is launch/overhead-bound (MXU sees
    # K=16/32 contractions, lanes are 75% padding); tune with realistic
    # batch / n_embd (multiples of 128/256) for meaningful perf numbers.
    batch, input_dim, n_embd, num_blocks = 8, 16, 32, 2

    key = jax.random.PRNGKey(0)
    kx, kp = jax.random.split(key)
    x = jax.random.normal(kx, (batch, input_dim), jnp.float32)
    params = make_params(kp, input_dim, n_embd, num_blocks)
    weight_args = preprocess_params(params)   # one-time cast/reshape (hoisted)

    logits = custom_network_forward(x, weight_args, num_blocks=num_blocks)
    logits = jax.block_until_ready(logits)

    ref = reference_forward(x, params, num_blocks)
    assert logits.shape == (batch,)
    # bf16 matmul inputs (f32 accumulation) + tanh-approx GELU -> relaxed tol
    assert jnp.allclose(logits, ref, atol=7.5e-2, rtol=5e-2), (logits, ref)
    print("KERNEL_OK")
</pallas_src>

<mosaic_0001>
module attributes {stable_mosaic.version = 11 : i64} {
  func.func @custom_network_kernel(%arg0: i32, %arg1: memref<8x16xbf16, #tpu.memory_space<vmem>>, %arg2: memref<16x32xbf16, #tpu.memory_space<vmem>>, %arg3: memref<1x32xf32, #tpu.memory_space<vmem>>, %arg4: memref<2x1x32xf32, #tpu.memory_space<vmem>>, %arg5: memref<2x1x32xf32, #tpu.memory_space<vmem>>, %arg6: memref<2x32x128xbf16, #tpu.memory_space<vmem>>, %arg7: memref<2x1x128xf32, #tpu.memory_space<vmem>>, %arg8: memref<2x128x32xbf16, #tpu.memory_space<vmem>>, %arg9: memref<2x1x32xf32, #tpu.memory_space<vmem>>, %arg10: memref<2x1x32xf32, #tpu.memory_space<vmem>>, %arg11: memref<2x1x32xf32, #tpu.memory_space<vmem>>, %arg12: memref<2x32x128xbf16, #tpu.memory_space<vmem>>, %arg13: memref<2x1x128xf32, #tpu.memory_space<vmem>>, %arg14: memref<2x128x32xbf16, #tpu.memory_space<vmem>>, %arg15: memref<2x1x32xf32, #tpu.memory_space<vmem>>, %arg16: memref<1x32xf32, #tpu.memory_space<vmem>>, %arg17: memref<1x8xf32, #tpu.memory_space<vmem>>) attributes {dimension_semantics = [#tpu.dimension_semantics<parallel>], iteration_bounds = array<i64: 1>, scalar_prefetch = 0 : i64, scratch_operands = 0 : i64, tpu.core_type = #tpu.core_type<tc>, window_params = [{transform_indices = @transform_0, window_bounds = array<i64: 8, 16>}, {pipeline_mode = #tpu.pipeline_mode<synchronous>, transform_indices = @transform_1, window_bounds = array<i64: 16, 32>}, {pipeline_mode = #tpu.pipeline_mode<synchronous>, transform_indices = @transform_2, window_bounds = array<i64: 1, 32>}, {pipeline_mode = #tpu.pipeline_mode<synchronous>, transform_indices = @transform_3, window_bounds = array<i64: 2, 1, 32>}, {pipeline_mode = #tpu.pipeline_mode<synchronous>, transform_indices = @transform_4, window_bounds = array<i64: 2, 1, 32>}, {pipeline_mode = #tpu.pipeline_mode<synchronous>, transform_indices = @transform_5, window_bounds = array<i64: 2, 32, 128>}, {pipeline_mode = #tpu.pipeline_mode<synchronous>, transform_indices = @transform_6, window_bounds = array<i64: 2, 1, 128>}, {pipeline_mode = #tpu.pipeline_mode<synchronous>, transform_indices = @transform_7, window_bounds = array<i64: 2, 128, 32>}, {pipeline_mode = #tpu.pipeline_mode<synchronous>, transform_indices = @transform_8, window_bounds = array<i64: 2, 1, 32>}, {pipeline_mode = #tpu.pipeline_mode<synchronous>, transform_indices = @transform_9, window_bounds = array<i64: 2, 1, 32>}, {pipeline_mode = #tpu.pipeline_mode<synchronous>, transform_indices = @transform_10, window_bounds = array<i64: 2, 1, 32>}, {pipeline_mode = #tpu.pipeline_mode<synchronous>, transform_indices = @transform_11, window_bounds = array<i64: 2, 32, 128>}, {pipeline_mode = #tpu.pipeline_mode<synchronous>, transform_indices = @transform_12, window_bounds = array<i64: 2, 1, 128>}, {pipeline_mode = #tpu.pipeline_mode<synchronous>, transform_indices = @transform_13, window_bounds = array<i64: 2, 128, 32>}, {pipeline_mode = #tpu.pipeline_mode<synchronous>, transform_indices = @transform_14, window_bounds = array<i64: 2, 1, 32>}, {pipeline_mode = #tpu.pipeline_mode<synchronous>, transform_indices = @transform_15, window_bounds = array<i64: 1, 32>}, {transform_indices = @transform_16, window_bounds = array<i64: 1, 8>}]} {
    %c0 = arith.constant 0 : index
    %c0_0 = arith.constant 0 : index
    %0 = vector.load %arg1[%c0, %c0_0] : memref<8x16xbf16, #tpu.memory_space<vmem>>, vector<8x16xbf16>
    %c0_1 = arith.constant 0 : index
    %c0_2 = arith.constant 0 : index
    %1 = vector.load %arg2[%c0_1, %c0_2] : memref<16x32xbf16, #tpu.memory_space<vmem>>, vector<16x32xbf16>
    %cst = arith.constant dense<0.000000e+00> : vector<8x32xf32>
    %2 = tpu.matmul %0, %1, %cst {dimension_numbers = #tpu.dot_dimension_numbers<[1], [0], [0], [1], [0, 0, 1, 1], [], []>} : vector<8x16xbf16>, vector<16x32xbf16>, vector<8x32xf32> -> vector<8x32xf32>
    %c0_3 = arith.constant 0 : index
    %c0_4 = arith.constant 0 : index
    %3 = vector.load %arg3[%c0_3, %c0_4] : memref<1x32xf32, #tpu.memory_space<vmem>>, vector<1x32xf32>
    %4 = vector.broadcast %3 : vector<1x32xf32> to vector<8x32xf32>
    %5 = arith.addf %2, %4 : vector<8x32xf32>
    %c0_5 = arith.constant 0 : index
    %c0_6 = arith.constant 0 : index
    %c0_7 = arith.constant 0 : index
    %6 = vector.load %arg4[%c0_5, %c0_6, %c0_7] : memref<2x1x32xf32, #tpu.memory_space<vmem>>, vector<1x1x32xf32>
    %7 = vector.shape_cast %6 : vector<1x1x32xf32> to vector<1x32xf32>
    %c0_8 = arith.constant 0 : index
    %c0_9 = arith.constant 0 : index
    %c0_10 = arith.constant 0 : index
    %8 = vector.load %arg5[%c0_8, %c0_9, %c0_10] : memref<2x1x32xf32, #tpu.memory_space<vmem>>, vector<1x1x32xf32>
    %9 = vector.shape_cast %8 : vector<1x1x32xf32> to vector<1x32xf32>
    %cst_11 = arith.constant dense<0.000000e+00> : vector<8xf32>
    %10 = vector.multi_reduction <add>, %5, %cst_11 [1] : vector<8x32xf32> to vector<8xf32>
    %11 = vector.shape_cast %10 : vector<8xf32> to vector<8x1xf32>
    %cst_12 = arith.constant 3.200000e+01 : f32
    %12 = vector.broadcast %cst_12 : f32 to vector<8x1xf32>
    %13 = arith.divf %11, %12 : vector<8x1xf32>
    %14 = vector.broadcast %13 : vector<8x1xf32> to vector<8x32xf32>
    %15 = arith.subf %5, %14 : vector<8x32xf32>
    %16 = arith.mulf %15, %15 : vector<8x32xf32>
    %cst_13 = arith.constant dense<0.000000e+00> : vector<8xf32>
    %17 = vector.multi_reduction <add>, %16, %cst_13 [1] : vector<8x32xf32> to vector<8xf32>
    %18 = vector.shape_cast %17 : vector<8xf32> to vector<8x1xf32>
    %cst_14 = arith.constant 3.200000e+01 : f32
    %19 = vector.broadcast %cst_14 : f32 to vector<8x1xf32>
    %20 = arith.divf %18, %19 : vector<8x1xf32>
    %cst_15 = arith.constant 9.99999974E-6 : f32
    %21 = vector.broadcast %cst_15 : f32 to vector<8x1xf32>
    %22 = arith.addf %20, %21 : vector<8x1xf32>
    %23 = math.rsqrt %22 : vector<8x1xf32>
    %24 = vector.broadcast %23 : vector<8x1xf32> to vector<8x32xf32>
    %25 = arith.mulf %15, %24 : vector<8x32xf32>
    %26 = vector.broadcast %7 : vector<1x32xf32> to vector<8x32xf32>
    %27 = arith.mulf %25, %26 : vector<8x32xf32>
    %28 = vector.broadcast %9 : vector<1x32xf32> to vector<8x32xf32>
    %29 = arith.addf %27, %28 : vector<8x32xf32>
    %c0_16 = arith.constant 0 : index
    %c0_17 = arith.constant 0 : index
    %c0_18 = arith.constant 0 : index
    %30 = vector.load %arg6[%c0_16, %c0_17, %c0_18] : memref<2x32x128xbf16, #tpu.memory_space<vmem>>, vector<1x32x128xbf16>
    %31 = vector.shape_cast %30 : vector<1x32x128xbf16> to vector<32x128xbf16>
    %c0_19 = arith.constant 0 : index
    %c0_20 = arith.constant 0 : index
    %c0_21 = arith.constant 0 : index
    %32 = vector.load %arg7[%c0_19, %c0_20, %c0_21] : memref<2x1x128xf32, #tpu.memory_space<vmem>>, vector<1x1x128xf32>
    %33 = vector.shape_cast %32 : vector<1x1x128xf32> to vector<1x128xf32>
    %c0_22 = arith.constant 0 : index
    %c0_23 = arith.constant 0 : index
    %c0_24 = arith.constant 0 : index
    %34 = vector.load %arg8[%c0_22, %c0_23, %c0_24] : memref<2x128x32xbf16, #tpu.memory_space<vmem>>, vector<1x128x32xbf16>
    %35 = vector.shape_cast %34 : vector<1x128x32xbf16> to vector<128x32xbf16>
    %c0_25 = arith.constant 0 : index
    %c0_26 = arith.constant 0 : index
    %c0_27 = arith.constant 0 : index
    %36 = vector.load %arg9[%c0_25, %c0_26, %c0_27] : memref<2x1x32xf32, #tpu.memory_space<vmem>>, vector<1x1x32xf32>
    %37 = vector.shape_cast %36 : vector<1x1x32xf32> to vector<1x32xf32>
    %38 = arith.truncf %29 : vector<8x32xf32> to vector<8x32xbf16>
    %cst_28 = arith.constant dense<0.000000e+00> : vector<8x128xf32>
    %39 = tpu.matmul %38, %31, %cst_28 {dimension_numbers = #tpu.dot_dimension_numbers<[1], [0], [0], [1], [0, 0, 1, 1], [], []>} : vector<8x32xbf16>, vector<32x128xbf16>, vector<8x128xf32> -> vector<8x128xf32>
    %40 = vector.broadcast %33 : vector<1x128xf32> to vector<8x128xf32>
    %41 = arith.addf %39, %40 : vector<8x128xf32>
    %42 = arith.mulf %41, %41 : vector<8x128xf32>
    %43 = arith.mulf %41, %42 : vector<8x128xf32>
    %cst_29 = arith.constant 4.471500e-02 : f32
    %44 = vector.broadcast %cst_29 : f32 to vector<8x128xf32>
    %45 = arith.mulf %44, %43 : vector<8x128xf32>
    %46 = arith.addf %41, %45 : vector<8x128xf32>
    %cst_30 = arith.constant 0.797884583 : f32
    %47 = vector.broadcast %cst_30 : f32 to vector<8x128xf32>
    %48 = arith.mulf %47, %46 : vector<8x128xf32>
    %49 = math.tanh %48 : vector<8x128xf32>
    %cst_31 = arith.constant 1.000000e+00 : f32
    %50 = vector.broadcast %cst_31 : f32 to vector<8x128xf32>
    %51 = arith.addf %50, %49 : vector<8x128xf32>
    %cst_32 = arith.constant 5.000000e-01 : f32
    %52 = vector.broadcast %cst_32 : f32 to vector<8x128xf32>
    %53 = arith.mulf %52, %51 : vector<8x128xf32>
    %54 = arith.mulf %41, %53 : vector<8x128xf32>
    %55 = arith.truncf %54 : vector<8x128xf32> to vector<8x128xbf16>
    %cst_33 = arith.constant dense<0.000000e+00> : vector<8x32xf32>
    %56 = tpu.matmul %55, %35, %cst_33 {dimension_numbers = #tpu.dot_dimension_numbers<[1], [0], [0], [1], [0, 0, 1, 1], [], []>} : vector<8x128xbf16>, vector<128x32xbf16>, vector<8x32xf32> -> vector<8x32xf32>
    %57 = vector.broadcast %37 : vector<1x32xf32> to vector<8x32xf32>
    %58 = arith.addf %56, %57 : vector<8x32xf32>
    %59 = arith.addf %5, %58 : vector<8x32xf32>
    %c0_34 = arith.constant 0 : index
    %c0_35 = arith.constant 0 : index
    %c0_36 = arith.constant 0 : index
    %60 = vector.load %arg10[%c0_34, %c0_35, %c0_36] : memref<2x1x32xf32, #tpu.memory_space<vmem>>, vector<1x1x32xf32>
    %61 = vector.shape_cast %60 : vector<1x1x32xf32> to vector<1x32xf32>
    %c0_37 = arith.constant 0 : index
    %c0_38 = arith.constant 0 : index
    %c0_39 = arith.constant 0 : index
    %62 = vector.load %arg11[%c0_37, %c0_38, %c0_39] : memref<2x1x32xf32, #tpu.memory_space<vmem>>, vector<1x1x32xf32>
    %63 = vector.shape_cast %62 : vector<1x1x32xf32> to vector<1x32xf32>
    %cst_40 = arith.constant dense<0.000000e+00> : vector<8xf32>
    %64 = vector.multi_reduction <add>, %59, %cst_40 [1] : vector<8x32xf32> to vector<8xf32>
    %65 = vector.shape_cast %64 : vector<8xf32> to vector<8x1xf32>
    %cst_41 = arith.constant 3.200000e+01 : f32
    %66 = vector.broadcast %cst_41 : f32 to vector<8x1xf32>
    %67 = arith.divf %65, %66 : vector<8x1xf32>
    %68 = vector.broadcast %67 : vector<8x1xf32> to vector<8x32xf32>
    %69 = arith.subf %59, %68 : vector<8x32xf32>
    %70 = arith.mulf %69, %69 : vector<8x32xf32>
    %cst_42 = arith.constant dense<0.000000e+00> : vector<8xf32>
    %71 = vector.multi_reduction <add>, %70, %cst_42 [1] : vector<8x32xf32> to vector<8xf32>
    %72 = vector.shape_cast %71 : vector<8xf32> to vector<8x1xf32>
    %cst_43 = arith.constant 3.200000e+01 : f32
    %73 = vector.broadcast %cst_43 : f32 to vector<8x1xf32>
    %74 = arith.divf %72, %73 : vector<8x1xf32>
    %cst_44 = arith.constant 9.99999974E-6 : f32
    %75 = vector.broadcast %cst_44 : f32 to vector<8x1xf32>
    %76 = arith.addf %74, %75 : vector<8x1xf32>
    %77 = math.rsqrt %76 : vector<8x1xf32>
    %78 = vector.broadcast %77 : vector<8x1xf32> to vector<8x32xf32>
    %79 = arith.mulf %69, %78 : vector<8x32xf32>
    %80 = vector.broadcast %61 : vector<1x32xf32> to vector<8x32xf32>
    %81 = arith.mulf %79, %80 : vector<8x32xf32>
    %82 = vector.broadcast %63 : vector<1x32xf32> to vector<8x32xf32>
    %83 = arith.addf %81, %82 : vector<8x32xf32>
    %c0_45 = arith.constant 0 : index
    %c0_46 = arith.constant 0 : index
    %c0_47 = arith.constant 0 : index
    %84 = vector.load %arg12[%c0_45, %c0_46, %c0_47] : memref<2x32x128xbf16, #tpu.memory_space<vmem>>, vector<1x32x128xbf16>
    %85 = vector.shape_cast %84 : vector<1x32x128xbf16> to vector<32x128xbf16>
    %c0_48 = arith.constant 0 : index
    %c0_49 = arith.constant 0 : index
    %c0_50 = arith.constant 0 : index
    %86 = vector.load %arg13[%c0_48, %c0_49, %c0_50] : memref<2x1x128xf32, #tpu.memory_space<vmem>>, vector<1x1x128xf32>
    %87 = vector.shape_cast %86 : vector<1x1x128xf32> to vector<1x128xf32>
    %c0_51 = arith.constant 0 : index
    %c0_52 = arith.constant 0 : index
    %c0_53 = arith.constant 0 : index
    %88 = vector.load %arg14[%c0_51, %c0_52, %c0_53] : memref<2x128x32xbf16, #tpu.memory_space<vmem>>, vector<1x128x32xbf16>
    %89 = vector.shape_cast %88 : vector<1x128x32xbf16> to vector<128x32xbf16>
    %c0_54 = arith.constant 0 : index
    %c0_55 = arith.constant 0 : index
    %c0_56 = arith.constant 0 : index
    %90 = vector.load %arg15[%c0_54, %c0_55, %c0_56] : memref<2x1x32xf32, #tpu.memory_space<vmem>>, vector<1x1x32xf32>
    %91 = vector.shape_cast %90 : vector<1x1x32xf32> to vector<1x32xf32>
    %92 = arith.truncf %83 : vector<8x32xf32> to vector<8x32xbf16>
    %cst_57 = arith.constant dense<0.000000e+00> : vector<8x128xf32>
    %93 = tpu.matmul %92, %85, %cst_57 {dimension_numbers = #tpu.dot_dimension_numbers<[1], [0], [0], [1], [0, 0, 1, 1], [], []>} : vector<8x32xbf16>, vector<32x128xbf16>, vector<8x128xf32> -> vector<8x128xf32>
    %94 = vector.broadcast %87 : vector<1x128xf32> to vector<8x128xf32>
    %95 = arith.addf %93, %94 : vector<8x128xf32>
    %96 = arith.mulf %95, %95 : vector<8x128xf32>
    %97 = arith.mulf %95, %96 : vector<8x128xf32>
    %cst_58 = arith.constant 4.471500e-02 : f32
    %98 = vector.broadcast %cst_58 : f32 to vector<8x128xf32>
    %99 = arith.mulf %98, %97 : vector<8x128xf32>
    %100 = arith.addf %95, %99 : vector<8x128xf32>
    %cst_59 = arith.constant 0.797884583 : f32
    %101 = vector.broadcast %cst_59 : f32 to vector<8x128xf32>
    %102 = arith.mulf %101, %100 : vector<8x128xf32>
    %103 = math.tanh %102 : vector<8x128xf32>
    %cst_60 = arith.constant 1.000000e+00 : f32
    %104 = vector.broadcast %cst_60 : f32 to vector<8x128xf32>
    %105 = arith.addf %104, %103 : vector<8x128xf32>
    %cst_61 = arith.constant 5.000000e-01 : f32
    %106 = vector.broadcast %cst_61 : f32 to vector<8x128xf32>
    %107 = arith.mulf %106, %105 : vector<8x128xf32>
    %108 = arith.mulf %95, %107 : vector<8x128xf32>
    %109 = arith.truncf %108 : vector<8x128xf32> to vector<8x128xbf16>
    %cst_62 = arith.constant dense<0.000000e+00> : vector<8x32xf32>
    %110 = tpu.matmul %109, %89, %cst_62 {dimension_numbers = #tpu.dot_dimension_numbers<[1], [0], [0], [1], [0, 0, 1, 1], [], []>} : vector<8x128xbf16>, vector<128x32xbf16>, vector<8x32xf32> -> vector<8x32xf32>
    %111 = vector.broadcast %91 : vector<1x32xf32> to vector<8x32xf32>
    %112 = arith.addf %110, %111 : vector<8x32xf32>
    %113 = arith.addf %59, %112 : vector<8x32xf32>
    %c1 = arith.constant 1 : index
    %c0_63 = arith.constant 0 : index
    %c0_64 = arith.constant 0 : index
    %114 = vector.load %arg4[%c1, %c0_63, %c0_64] : memref<2x1x32xf32, #tpu.memory_space<vmem>>, vector<1x1x32xf32>
    %115 = vector.shape_cast %114 : vector<1x1x32xf32> to vector<1x32xf32>
    %c1_65 = arith.constant 1 : index
    %c0_66 = arith.constant 0 : index
    %c0_67 = arith.constant 0 : index
    %116 = vector.load %arg5[%c1_65, %c0_66, %c0_67] : memref<2x1x32xf32, #tpu.memory_space<vmem>>, vector<1x1x32xf32>
    %117 = vector.shape_cast %116 : vector<1x1x32xf32> to vector<1x32xf32>
    %cst_68 = arith.constant dense<0.000000e+00> : vector<8xf32>
    %118 = vector.multi_reduction <add>, %113, %cst_68 [1] : vector<8x32xf32> to vector<8xf32>
    %119 = vector.shape_cast %118 : vector<8xf32> to vector<8x1xf32>
    %cst_69 = arith.constant 3.200000e+01 : f32
    %120 = vector.broadcast %cst_69 : f32 to vector<8x1xf32>
    %121 = arith.divf %119, %120 : vector<8x1xf32>
    %122 = vector.broadcast %121 : vector<8x1xf32> to vector<8x32xf32>
    %123 = arith.subf %113, %122 : vector<8x32xf32>
    %124 = arith.mulf %123, %123 : vector<8x32xf32>
    %cst_70 = arith.constant dense<0.000000e+00> : vector<8xf32>
    %125 = vector.multi_reduction <add>, %124, %cst_70 [1] : vector<8x32xf32> to vector<8xf32>
    %126 = vector.shape_cast %125 : vector<8xf32> to vector<8x1xf32>
    %cst_71 = arith.constant 3.200000e+01 : f32
    %127 = vector.broadcast %cst_71 : f32 to vector<8x1xf32>
    %128 = arith.divf %126, %127 : vector<8x1xf32>
    %cst_72 = arith.constant 9.99999974E-6 : f32
    %129 = vector.broadcast %cst_72 : f32 to vector<8x1xf32>
    %130 = arith.addf %128, %129 : vector<8x1xf32>
    %131 = math.rsqrt %130 : vector<8x1xf32>
    %132 = vector.broadcast %131 : vector<8x1xf32> to vector<8x32xf32>
    %133 = arith.mulf %123, %132 : vector<8x32xf32>
    %134 = vector.broadcast %115 : vector<1x32xf32> to vector<8x32xf32>
    %135 = arith.mulf %133, %134 : vector<8x32xf32>
    %136 = vector.broadcast %117 : vector<1x32xf32> to vector<8x32xf32>
    %137 = arith.addf %135, %136 : vector<8x32xf32>
    %c1_73 = arith.constant 1 : index
    %c0_74 = arith.constant 0 : index
    %c0_75 = arith.constant 0 : index
    %138 = vector.load %arg6[%c1_73, %c0_74, %c0_75] : memref<2x32x128xbf16, #tpu.memory_space<vmem>>, vector<1x32x128xbf16>
    %139 = vector.shape_cast %138 : vector<1x32x128xbf16> to vector<32x128xbf16>
    %c1_76 = arith.constant 1 : index
    %c0_77 = arith.constant 0 : index
    %c0_78 = arith.constant 0 : index
    %140 = vector.load %arg7[%c1_76, %c0_77, %c0_78] : memref<2x1x128xf32, #tpu.memory_space<vmem>>, vector<1x1x128xf32>
    %141 = vector.shape_cast %140 : vector<1x1x128xf32> to vector<1x128xf32>
    %c1_79 = arith.constant 1 : index
    %c0_80 = arith.constant 0 : index
    %c0_81 = arith.constant 0 : index
    %142 = vector.load %arg8[%c1_79, %c0_80, %c0_81] : memref<2x128x32xbf16, #tpu.memory_space<vmem>>, vector<1x128x32xbf16>
    %143 = vector.shape_cast %142 : vector<1x128x32xbf16> to vector<128x32xbf16>
    %c1_82 = arith.constant 1 : index
    %c0_83 = arith.constant 0 : index
    %c0_84 = arith.constant 0 : index
    %144 = vector.load %arg9[%c1_82, %c0_83, %c0_84] : memref<2x1x32xf32, #tpu.memory_space<vmem>>, vector<1x1x32xf32>
    %145 = vector.shape_cast %144 : vector<1x1x32xf32> to vector<1x32xf32>
    %146 = arith.truncf %137 : vector<8x32xf32> to vector<8x32xbf16>
    %cst_85 = arith.constant dense<0.000000e+00> : vector<8x128xf32>
    %147 = tpu.matmul %146, %139, %cst_85 {dimension_numbers = #tpu.dot_dimension_numbers<[1], [0], [0], [1], [0, 0, 1, 1], [], []>} : vector<8x32xbf16>, vector<32x128xbf16>, vector<8x128xf32> -> vector<8x128xf32>
    %148 = vector.broadcast %141 : vector<1x128xf32> to vector<8x128xf32>
    %149 = arith.addf %147, %148 : vector<8x128xf32>
    %150 = arith.mulf %149, %149 : vector<8x128xf32>
    %151 = arith.mulf %149, %150 : vector<8x128xf32>
    %cst_86 = arith.constant 4.471500e-02 : f32
    %152 = vector.broadcast %cst_86 : f32 to vector<8x128xf32>
    %153 = arith.mulf %152, %151 : vector<8x128xf32>
    %154 = arith.addf %149, %153 : vector<8x128xf32>
    %cst_87 = arith.constant 0.797884583 : f32
    %155 = vector.broadcast %cst_87 : f32 to vector<8x128xf32>
    %156 = arith.mulf %155, %154 : vector<8x128xf32>
    %157 = math.tanh %156 : vector<8x128xf32>
    %cst_88 = arith.constant 1.000000e+00 : f32
    %158 = vector.broadcast %cst_88 : f32 to vector<8x128xf32>
    %159 = arith.addf %158, %157 : vector<8x128xf32>
    %cst_89 = arith.constant 5.000000e-01 : f32
    %160 = vector.broadcast %cst_89 : f32 to vector<8x128xf32>
    %161 = arith.mulf %160, %159 : vector<8x128xf32>
    %162 = arith.mulf %149, %161 : vector<8x128xf32>
    %163 = arith.truncf %162 : vector<8x128xf32> to vector<8x128xbf16>
    %cst_90 = arith.constant dense<0.000000e+00> : vector<8x32xf32>
    %164 = tpu.matmul %163, %143, %cst_90 {dimension_numbers = #tpu.dot_dimension_numbers<[1], [0], [0], [1], [0, 0, 1, 1], [], []>} : vector<8x128xbf16>, vector<128x32xbf16>, vector<8x32xf32> -> vector<8x32xf32>
    %165 = vector.broadcast %145 : vector<1x32xf32> to vector<8x32xf32>
    %166 = arith.addf %164, %165 : vector<8x32xf32>
    %167 = arith.addf %113, %166 : vector<8x32xf32>
    %c1_91 = arith.constant 1 : index
    %c0_92 = arith.constant 0 : index
    %c0_93 = arith.constant 0 : index
    %168 = vector.load %arg10[%c1_91, %c0_92, %c0_93] : memref<2x1x32xf32, #tpu.memory_space<vmem>>, vector<1x1x32xf32>
    %169 = vector.shape_cast %168 : vector<1x1x32xf32> to vector<1x32xf32>
    %c1_94 = arith.constant 1 : index
    %c0_95 = arith.constant 0 : index
    %c0_96 = arith.constant 0 : index
    %170 = vector.load %arg11[%c1_94, %c0_95, %c0_96] : memref<2x1x32xf32, #tpu.memory_space<vmem>>, vector<1x1x32xf32>
    %171 = vector.shape_cast %170 : vector<1x1x32xf32> to vector<1x32xf32>
    %cst_97 = arith.constant dense<0.000000e+00> : vector<8xf32>
    %172 = vector.multi_reduction <add>, %167, %cst_97 [1] : vector<8x32xf32> to vector<8xf32>
    %173 = vector.shape_cast %172 : vector<8xf32> to vector<8x1xf32>
    %cst_98 = arith.constant 3.200000e+01 : f32
    %174 = vector.broadcast %cst_98 : f32 to vector<8x1xf32>
    %175 = arith.divf %173, %174 : vector<8x1xf32>
    %176 = vector.broadcast %175 : vector<8x1xf32> to vector<8x32xf32>
    %177 = arith.subf %167, %176 : vector<8x32xf32>
    %178 = arith.mulf %177, %177 : vector<8x32xf32>
    %cst_99 = arith.constant dense<0.000000e+00> : vector<8xf32>
    %179 = vector.multi_reduction <add>, %178, %cst_99 [1] : vector<8x32xf32> to vector<8xf32>
    %180 = vector.shape_cast %179 : vector<8xf32> to vector<8x1xf32>
    %cst_100 = arith.constant 3.200000e+01 : f32
    %181 = vector.broadcast %cst_100 : f32 to vector<8x1xf32>
    %182 = arith.divf %180, %181 : vector<8x1xf32>
    %cst_101 = arith.constant 9.99999974E-6 : f32
    %183 = vector.broadcast %cst_101 : f32 to vector<8x1xf32>
    %184 = arith.addf %182, %183 : vector<8x1xf32>
    %185 = math.rsqrt %184 : vector<8x1xf32>
    %186 = vector.broadcast %185 : vector<8x1xf32> to vector<8x32xf32>
    %187 = arith.mulf %177, %186 : vector<8x32xf32>
    %188 = vector.broadcast %169 : vector<1x32xf32> to vector<8x32xf32>
    %189 = arith.mulf %187, %188 : vector<8x32xf32>
    %190 = vector.broadcast %171 : vector<1x32xf32> to vector<8x32xf32>
    %191 = arith.addf %189, %190 : vector<8x32xf32>
    %c1_102 = arith.constant 1 : index
    %c0_103 = arith.constant 0 : index
    %c0_104 = arith.constant 0 : index
    %192 = vector.load %arg12[%c1_102, %c0_103, %c0_104] : memref<2x32x128xbf16, #tpu.memory_space<vmem>>, vector<1x32x128xbf16>
    %193 = vector.shape_cast %192 : vector<1x32x128xbf16> to vector<32x128xbf16>
    %c1_105 = arith.constant 1 : index
    %c0_106 = arith.constant 0 : index
    %c0_107 = arith.constant 0 : index
    %194 = vector.load %arg13[%c1_105, %c0_106, %c0_107] : memref<2x1x128xf32, #tpu.memory_space<vmem>>, vector<1x1x128xf32>
    %195 = vector.shape_cast %194 : vector<1x1x128xf32> to vector<1x128xf32>
    %c1_108 = arith.constant 1 : index
    %c0_109 = arith.constant 0 : index
    %c0_110 = arith.constant 0 : index
    %196 = vector.load %arg14[%c1_108, %c0_109, %c0_110] : memref<2x128x32xbf16, #tpu.memory_space<vmem>>, vector<1x128x32xbf16>
    %197 = vector.shape_cast %196 : vector<1x128x32xbf16> to vector<128x32xbf16>
    %c1_111 = arith.constant 1 : index
    %c0_112 = arith.constant 0 : index
    %c0_113 = arith.constant 0 : index
    %198 = vector.load %arg15[%c1_111, %c0_112, %c0_113] : memref<2x1x32xf32, #tpu.memory_space<vmem>>, vector<1x1x32xf32>
    %199 = vector.shape_cast %198 : vector<1x1x32xf32> to vector<1x32xf32>
    %200 = arith.truncf %191 : vector<8x32xf32> to vector<8x32xbf16>
    %cst_114 = arith.constant dense<0.000000e+00> : vector<8x128xf32>
    %201 = tpu.matmul %200, %193, %cst_114 {dimension_numbers = #tpu.dot_dimension_numbers<[1], [0], [0], [1], [0, 0, 1, 1], [], []>} : vector<8x32xbf16>, vector<32x128xbf16>, vector<8x128xf32> -> vector<8x128xf32>
    %202 = vector.broadcast %195 : vector<1x128xf32> to vector<8x128xf32>
    %203 = arith.addf %201, %202 : vector<8x128xf32>
    %204 = arith.mulf %203, %203 : vector<8x128xf32>
    %205 = arith.mulf %203, %204 : vector<8x128xf32>
    %cst_115 = arith.constant 4.471500e-02 : f32
    %206 = vector.broadcast %cst_115 : f32 to vector<8x128xf32>
    %207 = arith.mulf %206, %205 : vector<8x128xf32>
    %208 = arith.addf %203, %207 : vector<8x128xf32>
    %cst_116 = arith.constant 0.797884583 : f32
    %209 = vector.broadcast %cst_116 : f32 to vector<8x128xf32>
    %210 = arith.mulf %209, %208 : vector<8x128xf32>
    %211 = math.tanh %210 : vector<8x128xf32>
    %cst_117 = arith.constant 1.000000e+00 : f32
    %212 = vector.broadcast %cst_117 : f32 to vector<8x128xf32>
    %213 = arith.addf %212, %211 : vector<8x128xf32>
    %cst_118 = arith.constant 5.000000e-01 : f32
    %214 = vector.broadcast %cst_118 : f32 to vector<8x128xf32>
    %215 = arith.mulf %214, %213 : vector<8x128xf32>
    %216 = arith.mulf %203, %215 : vector<8x128xf32>
    %217 = arith.truncf %216 : vector<8x128xf32> to vector<8x128xbf16>
    %cst_119 = arith.constant dense<0.000000e+00> : vector<8x32xf32>
    %218 = tpu.matmul %217, %197, %cst_119 {dimension_numbers = #tpu.dot_dimension_numbers<[1], [0], [0], [1], [0, 0, 1, 1], [], []>} : vector<8x128xbf16>, vector<128x32xbf16>, vector<8x32xf32> -> vector<8x32xf32>
    %219 = vector.broadcast %199 : vector<1x32xf32> to vector<8x32xf32>
    %220 = arith.addf %218, %219 : vector<8x32xf32>
    %221 = arith.addf %167, %220 : vector<8x32xf32>
    %c0_120 = arith.constant 0 : index
    %c0_121 = arith.constant 0 : index
    %222 = vector.load %arg16[%c0_120, %c0_121] : memref<1x32xf32, #tpu.memory_space<vmem>>, vector<1x32xf32>
    %223 = vector.broadcast %222 : vector<1x32xf32> to vector<8x32xf32>
    %224 = arith.mulf %221, %223 : vector<8x32xf32>
    %cst_122 = arith.constant dense<0.000000e+00> : vector<8xf32>
    %225 = vector.multi_reduction <add>, %224, %cst_122 [1] : vector<8x32xf32> to vector<8xf32>
    %226 = vector.shape_cast %225 : vector<8xf32> to vector<1x8xf32>
    %c0_123 = arith.constant 0 : index
    %c0_124 = arith.constant 0 : index
    %227 = vector.load %arg17[%c0_123, %c0_124] : memref<1x8xf32, #tpu.memory_space<vmem>>, vector<1x8xf32>
    tpu.vector_store %arg17[%c0_123, %c0_124], %226 {strides = array<i32>} : memref<1x8xf32, #tpu.memory_space<vmem>>, vector<1x8xf32>,
    return
  }
  func.func @transform_0(%arg0: i32) -> (i32, i32) {
    %c0_i32 = arith.constant 0 : i32
    %c0_i32_0 = arith.constant 0 : i32
    return %arg0, %c0_i32 : i32, i32
  }
  func.func @transform_1(%arg0: i32) -> (i32, i32) {
    %c0_i32 = arith.constant 0 : i32
    %c0_i32_0 = arith.constant 0 : i32
    %c0_i32_1 = arith.constant 0 : i32
    return %c0_i32, %c0_i32_0 : i32, i32
  }
  func.func @transform_2(%arg0: i32) -> (i32, i32) {
    %c0_i32 = arith.constant 0 : i32
    %c0_i32_0 = arith.constant 0 : i32
    %c0_i32_1 = arith.constant 0 : i32
    return %c0_i32, %c0_i32_0 : i32, i32
  }
  func.func @transform_3(%arg0: i32) -> (i32, i32, i32) {
    %c0_i32 = arith.constant 0 : i32
    %c0_i32_0 = arith.constant 0 : i32
    %c0_i32_1 = arith.constant 0 : i32
    %c0_i32_2 = arith.constant 0 : i32
    return %c0_i32, %c0_i32_0, %c0_i32_1 : i32, i32, i32
  }
  func.func @transform_4(%arg0: i32) -> (i32, i32, i32) {
    %c0_i32 = arith.constant 0 : i32
    %c0_i32_0 = arith.constant 0 : i32
    %c0_i32_1 = arith.constant 0 : i32
    %c0_i32_2 = arith.constant 0 : i32
    return %c0_i32, %c0_i32_0, %c0_i32_1 : i32, i32, i32
  }
  func.func @transform_5(%arg0: i32) -> (i32, i32, i32) {
    %c0_i32 = arith.constant 0 : i32
    %c0_i32_0 = arith.constant 0 : i32
    %c0_i32_1 = arith.constant 0 : i32
    %c0_i32_2 = arith.constant 0 : i32
    return %c0_i32, %c0_i32_0, %c0_i32_1 : i32, i32, i32
  }
  func.func @transform_6(%arg0: i32) -> (i32, i32, i32) {
    %c0_i32 = arith.constant 0 : i32
    %c0_i32_0 = arith.constant 0 : i32
    %c0_i32_1 = arith.constant 0 : i32
    %c0_i32_2 = arith.constant 0 : i32
    return %c0_i32, %c0_i32_0, %c0_i32_1 : i32, i32, i32
  }
  func.func @transform_7(%arg0: i32) -> (i32, i32, i32) {
    %c0_i32 = arith.constant 0 : i32
    %c0_i32_0 = arith.constant 0 : i32
    %c0_i32_1 = arith.constant 0 : i32
    %c0_i32_2 = arith.constant 0 : i32
    return %c0_i32, %c0_i32_0, %c0_i32_1 : i32, i32, i32
  }
  func.func @transform_8(%arg0: i32) -> (i32, i32, i32) {
    %c0_i32 = arith.constant 0 : i32
    %c0_i32_0 = arith.constant 0 : i32
    %c0_i32_1 = arith.constant 0 : i32
    %c0_i32_2 = arith.constant 0 : i32
    return %c0_i32, %c0_i32_0, %c0_i32_1 : i32, i32, i32
  }
  func.func @transform_9(%arg0: i32) -> (i32, i32, i32) {
    %c0_i32 = arith.constant 0 : i32
    %c0_i32_0 = arith.constant 0 : i32
    %c0_i32_1 = arith.constant 0 : i32
    %c0_i32_2 = arith.constant 0 : i32
    return %c0_i32, %c0_i32_0, %c0_i32_1 : i32, i32, i32
  }
  func.func @transform_10(%arg0: i32) -> (i32, i32, i32) {
    %c0_i32 = arith.constant 0 : i32
    %c0_i32_0 = arith.constant 0 : i32
    %c0_i32_1 = arith.constant 0 : i32
    %c0_i32_2 = arith.constant 0 : i32
    return %c0_i32, %c0_i32_0, %c0_i32_1 : i32, i32, i32
  }
  func.func @transform_11(%arg0: i32) -> (i32, i32, i32) {
    %c0_i32 = arith.constant 0 : i32
    %c0_i32_0 = arith.constant 0 : i32
    %c0_i32_1 = arith.constant 0 : i32
    %c0_i32_2 = arith.constant 0 : i32
    return %c0_i32, %c0_i32_0, %c0_i32_1 : i32, i32, i32
  }
  func.func @transform_12(%arg0: i32) -> (i32, i32, i32) {
    %c0_i32 = arith.constant 0 : i32
    %c0_i32_0 = arith.constant 0 : i32
    %c0_i32_1 = arith.constant 0 : i32
    %c0_i32_2 = arith.constant 0 : i32
    return %c0_i32, %c0_i32_0, %c0_i32_1 : i32, i32, i32
  }
  func.func @transform_13(%arg0: i32) -> (i32, i32, i32) {
    %c0_i32 = arith.constant 0 : i32
    %c0_i32_0 = arith.constant 0 : i32
    %c0_i32_1 = arith.constant 0 : i32
    %c0_i32_2 = arith.constant 0 : i32
    return %c0_i32, %c0_i32_0, %c0_i32_1 : i32, i32, i32
  }
  func.func @transform_14(%arg0: i32) -> (i32, i32, i32) {
    %c0_i32 = arith.constant 0 : i32
    %c0_i32_0 = arith.constant 0 : i32
    %c0_i32_1 = arith.constant 0 : i32
    %c0_i32_2 = arith.constant 0 : i32
    return %c0_i32, %c0_i32_0, %c0_i32_1 : i32, i32, i32
  }
  func.func @transform_15(%arg0: i32) -> (i32, i32) {
    %c0_i32 = arith.constant 0 : i32
    %c0_i32_0 = arith.constant 0 : i32
    %c0_i32_1 = arith.constant 0 : i32
    return %c0_i32, %c0_i32_0 : i32, i32
  }
  func.func @transform_16(%arg0: i32) -> (i32, i32) {
    %c0_i32 = arith.constant 0 : i32
    %c0_i32_0 = arith.constant 0 : i32
    return %c0_i32, %arg0 : i32, i32
  }
}

</mosaic_0001>

<llo_original>
// kernel: tpu_custom_call.1
$region0: #{tpu_custom_call.1}
  #allocation0 [shape = 'u32[]', space=smem, size = 0x4, offset = 0x4, fixed_abs, tag = 'smem constant byte address 0x4 - core index']
  #allocation1 [shape = 'u32[144,128]{1,0:T(1,128)}', space=vmem, size = 0x12000, scoped, tag = 'internal scratch']
  %s0 = inlined_call_operand.vmem [shape: bf16[8,16], index: 0, kind: input, shape index: {}]
  %s1 = inlined_call_operand.vmem [shape: bf16[16,32], index: 1, kind: input, shape index: {}]
  %s2 = inlined_call_operand.vmem [shape: f32[1,32], index: 2, kind: input, shape index: {}]
  %s3 = inlined_call_operand.vmem [shape: f32[2,1,32], index: 3, kind: input, shape index: {}]
  %s4 = inlined_call_operand.vmem [shape: f32[2,1,32], index: 4, kind: input, shape index: {}]
  %s5 = inlined_call_operand.vmem [shape: bf16[2,32,128], index: 5, kind: input, shape index: {}]
  %s6 = inlined_call_operand.vmem [shape: f32[2,1,128], index: 6, kind: input, shape index: {}]
  %s7 = inlined_call_operand.vmem [shape: bf16[2,128,32], index: 7, kind: input, shape index: {}]
  %s8 = inlined_call_operand.vmem [shape: f32[2,1,32], index: 8, kind: input, shape index: {}]
  %s9 = inlined_call_operand.vmem [shape: f32[2,1,32], index: 9, kind: input, shape index: {}]
  %s10 = inlined_call_operand.vmem [shape: f32[2,1,32], index: 10, kind: input, shape index: {}]
  %s11 = inlined_call_operand.vmem [shape: bf16[2,32,128], index: 11, kind: input, shape index: {}]
  %s12 = inlined_call_operand.vmem [shape: f32[2,1,128], index: 12, kind: input, shape index: {}]
  %s13 = inlined_call_operand.vmem [shape: bf16[2,128,32], index: 13, kind: input, shape index: {}]
  %s14 = inlined_call_operand.vmem [shape: f32[2,1,32], index: 14, kind: input, shape index: {}]
  %s15 = inlined_call_operand.vmem [shape: f32[1,32], index: 15, kind: input, shape index: {}]
  %s16 = inlined_call_operand.hbm [shape: f32[1,8], index: 16, kind: output, shape index: {}]
  %s17 = sld [smem:[#allocation0]]
  $region74: #{tpu_custom_call.1} parent=0
    _
  %s19 = ssub.s32 1, %s17
  %s20 = scalar_select 0, %s19, %s17
  $region1: #{tpu_custom_call.1} parent=0
    #allocation2 [shape = 'u8[512]{0}', space=vmem, size = 0x400, scoped, tag = 'output window, operand 0, single buffered']
    #allocation3 [shape = 's32[1]{0}', space=sflag, size = 0x4, scoped, tag = 'scoped memory for tpu_custom_call.1']
    %21 = vsyncpa [#allocation3], 0
    // Predicated region
    $region2: #{tpu_custom_call.1} parent=1 // pred_check
      _
    $region3: #{tpu_custom_call.1} parent=1 // pred_check_branch
      %23 = sbr.rel (0) target = $region5
    $region4: #{tpu_custom_call.1} parent=1 // pred_region
      _
    $region5: #{tpu_custom_call.1} parent=1 // pred_fallthru
      _
    // Predicated region
    $region6: #{tpu_custom_call.1} parent=1 // pred_check
      _
    $region7: #{tpu_custom_call.1} parent=1 // pred_check_branch
      %25 = sbr.rel (0) target = $region9
    $region8: #{tpu_custom_call.1} parent=1 // pred_region
      _
    $region9: #{tpu_custom_call.1} parent=1 // pred_fallthru
      _
    // Predicated region
    $region10: #{tpu_custom_call.1} parent=1 // pred_check
      _
    $region11: #{tpu_custom_call.1} parent=1 // pred_check_branch
      %27 = sbr.rel (0) target = $region13
    $region12: #{tpu_custom_call.1} parent=1 // pred_region
      _
    $region13: #{tpu_custom_call.1} parent=1 // pred_fallthru
      _
    // Predicated region
    $region14: #{tpu_custom_call.1} parent=1 // pred_check
      _
    $region15: #{tpu_custom_call.1} parent=1 // pred_check_branch
      %29 = sbr.rel (0) target = $region17
    $region16: #{tpu_custom_call.1} parent=1 // pred_region
      _
    $region17: #{tpu_custom_call.1} parent=1 // pred_fallthru
      _
    // Predicated region
    $region18: #{tpu_custom_call.1} parent=1 // pred_check
      _
    $region19: #{tpu_custom_call.1} parent=1 // pred_check_branch
      %31 = sbr.rel (0) target = $region21
    $region20: #{tpu_custom_call.1} parent=1 // pred_region
      _
    $region21: #{tpu_custom_call.1} parent=1 // pred_fallthru
      _
    // Predicated region
    $region22: #{tpu_custom_call.1} parent=1 // pred_check
      _
    $region23: #{tpu_custom_call.1} parent=1 // pred_check_branch
      %33 = sbr.rel (0) target = $region25
    $region24: #{tpu_custom_call.1} parent=1 // pred_region
      _
    $region25: #{tpu_custom_call.1} parent=1 // pred_fallthru
      _
    // Predicated region
    $region26: #{tpu_custom_call.1} parent=1 // pred_check
      _
    $region27: #{tpu_custom_call.1} parent=1 // pred_check_branch
      %35 = sbr.rel (0) target = $region29
    $region28: #{tpu_custom_call.1} parent=1 // pred_region
      _
    $region29: #{tpu_custom_call.1} parent=1 // pred_fallthru
      _
    // Predicated region
    $region30: #{tpu_custom_call.1} parent=1 // pred_check
      _
    $region31: #{tpu_custom_call.1} parent=1 // pred_check_branch
      %37 = sbr.rel (0) target = $region33
    $region32: #{tpu_custom_call.1} parent=1 // pred_region
      _
    $region33: #{tpu_custom_call.1} parent=1 // pred_fallthru
      _
    // Predicated region
    $region34: #{tpu_custom_call.1} parent=1 // pred_check
      _
    $region35: #{tpu_custom_call.1} parent=1 // pred_check_branch
      %39 = sbr.rel (0) target = $region37
    $region36: #{tpu_custom_call.1} parent=1 // pred_region
      _
    $region37: #{tpu_custom_call.1} parent=1 // pred_fallthru
      _
    // Predicated region
    $region38: #{tpu_custom_call.1} parent=1 // pred_check
      _
    $region39: #{tpu_custom_call.1} parent=1 // pred_check_branch
      %41 = sbr.rel (0) target = $region41
    $region40: #{tpu_custom_call.1} parent=1 // pred_region
      _
    $region41: #{tpu_custom_call.1} parent=1 // pred_fallthru
      _
    // Predicated region
    $region42: #{tpu_custom_call.1} parent=1 // pred_check
      _
    $region43: #{tpu_custom_call.1} parent=1 // pred_check_branch
      %43 = sbr.rel (0) target = $region45
    $region44: #{tpu_custom_call.1} parent=1 // pred_region
      _
    $region45: #{tpu_custom_call.1} parent=1 // pred_fallthru
      _
    // Predicated region
    $region46: #{tpu_custom_call.1} parent=1 // pred_check
      _
    $region47: #{tpu_custom_call.1} parent=1 // pred_check_branch
      %45 = sbr.rel (0) target = $region49
    $region48: #{tpu_custom_call.1} parent=1 // pred_region
      _
    $region49: #{tpu_custom_call.1} parent=1 // pred_fallthru
      _
    // Predicated region
    $region50: #{tpu_custom_call.1} parent=1 // pred_check
      _
    $region51: #{tpu_custom_call.1} parent=1 // pred_check_branch
      %47 = sbr.rel (0) target = $region53
    $region52: #{tpu_custom_call.1} parent=1 // pred_region
      _
    $region53: #{tpu_custom_call.1} parent=1 // pred_fallthru
      _
    // Predicated region
    $region54: #{tpu_custom_call.1} parent=1 // pred_check
      _
    $region55: #{tpu_custom_call.1} parent=1 // pred_check_branch
      %49 = sbr.rel (0) target = $region57
    $region56: #{tpu_custom_call.1} parent=1 // pred_region
      _
    $region57: #{tpu_custom_call.1} parent=1 // pred_fallthru
      _
    // Predicated region
    $region58: #{tpu_custom_call.1} parent=1 // pred_check
      _
    $region59: #{tpu_custom_call.1} parent=1 // pred_check_branch
      %51 = sbr.rel (0) target = $region61
    $region60: #{tpu_custom_call.1} parent=1 // pred_region
      _
    $region61: #{tpu_custom_call.1} parent=1 // pred_fallthru
      _
    // Predicated region
    $region62: #{tpu_custom_call.1} parent=1 // pred_check
      _
    $region63: #{tpu_custom_call.1} parent=1 // pred_check_branch
      %53 = sbr.rel (0) target = $region65
    $region64: #{tpu_custom_call.1} parent=1 // pred_region
      _
    $region65: #{tpu_custom_call.1} parent=1 // pred_fallthru
      _
    %v55 = vld [vmem:[%s0] sm:$0xf]
    %v56 = vld [vmem:[%s1] sm:$0xf]
    %v57 = vld [vmem:[%s1 + $0x4] sm:$0xf]
    %v58 = vld [vmem:[%s2] sm:$0x1]
    %v60 = vlaneseq
    %v61 = vshrl.u32 %v60, 7
    %v62 = vsub.s32 0, %v61
    %v63 = vrot.slane %v58, %v62
    %v67 = vunpack.c.l.b16 %v56
    %v68 = vunpack.c.l.b16 %v57
    %v69 = vpack.c.b16 %v68, %v67
    %vm71 = vcmask 130048
    %v73 = vsel %vm71, %v55, 0
    %75 = vmatprep.subr.bf16.mxu0 0
    %76 = vmatpush1.bf16.msra.mxu0 0
    %77 = vmatprep.subr.bf16.mxu0 0
    %78 = vmatpush1.bf16.msra.mxu0 0
    %79 = vmatprep.subr.bf16.mxu0 0
    %80 = vmatpush1.bf16.msra.mxu0 0
    %81 = vmatprep.subr.bf16.mxu0 0
    %82 = vmatpush1.bf16.msra.mxu0 0
    %83 = vmatprep.subr.bf16.mxu0 0
    %84 = vmatpush1.bf16.msra.mxu0 0
    %85 = vmatprep.subr.bf16.mxu0 0
    %86 = vmatpush1.bf16.msra.mxu0 0
    %87 = vmatprep.subr.bf16.mxu0 0
    %88 = vmatpush1.bf16.msra.mxu0 0
    %89 = vmatprep.subr.bf16.mxu0 0
    %90 = vmatpush1.bf16.msra.mxu0 %v69
    %91 = vmatprep.subr.bf16.mxu0 0
    %92 = vmatpush2.bf16.msra.mxu0 0
    %93 = vmatprep.subr.bf16.mxu0 0
    %94 = vmatpush2.bf16.msra.mxu0 0
    %95 = vmatprep.subr.bf16.mxu0 0
    %96 = vmatpush2.bf16.msra.mxu0 0
    %97 = vmatprep.subr.bf16.mxu0 0
    %98 = vmatpush2.bf16.msra.mxu0 0
    %99 = vmatprep.subr.bf16.mxu0 0
    %100 = vmatpush2.bf16.msra.mxu0 0
    %101 = vmatprep.subr.bf16.mxu0 0
    %102 = vmatpush2.bf16.msra.mxu0 0
    %103 = vmatprep.subr.bf16.mxu0 0
    %104 = vmatpush2.bf16.msra.mxu0 0
    %105 = vmatprep.subr.bf16.mxu0 0
    %106 = vmatpush2.bf16.msra.mxu0 0
    %107 = vmatprep.mubr.bf16.mxu0 0
    %108 = vmatmul.mubr.bf16.gmra.mxu0 %v73
    %v109 = vpop.f32.mrf.mxu0
    %v110 = vadd.f32 %v63, %v109
    %v111 = vpop.f32.mrf.mxu0
    %v112 = vpop.f32.mrf.mxu0
    %v113 = vpop.f32.mrf.mxu0
    %114 = vdwg.mxu0
    %v115 = vld [vmem:[%s3] sm:$0x1]
    %v116 = vld [vmem:[%s4] sm:$0x1]
    %vm117 = vcmask 261120
    %v118 = vsel %vm117, %v110, 0.0
    %119 = vadd.xlane.f32.xlu0 %v118
    %v120 = vpop.xlane.xlu0 %119
    %v121 = vrcp.pop 32.0
    %v122 = vmul.f32 %v120, %v121
    %v123 = vsub.f32 %v110, %v122
    %v124 = vmul.f32 %v123, %v123
    %v125 = vsel %vm117, %v124, 0.0
    %126 = vadd.xlane.f32.xlu0 %v125
    %v127 = vpop.xlane.xlu0 %126
    %v128 = vmul.f32 %v127, %v121
    %v129 = vadd.f32 %v128, 1e-05
    %v130 = vrsqrt.pop %v129
    %v131 = vmul.f32 %v123, %v130
    %v133 = vlaneseq
    %v134 = vshrl.u32 %v133, 7
    %v135 = vsub.s32 0, %v134
    %v136 = vrot.slane %v115, %v135
    %v138 = vmul.f32 %v131, %v136
    %v140 = vlaneseq
    %v141 = vshrl.u32 %v140, 7
    %v142 = vsub.s32 0, %v141
    %v143 = vrot.slane %v116, %v142
    %v145 = vadd.f32 %v138, %v143
    %v146 = vld [vmem:[%s5] sm:$0xf]
    %v147 = vld [vmem:[%s5 + $0x4] sm:$0xf]
    %v148 = vld [vmem:[%s5 + $0x8] sm:$0xf]
    %v149 = vld [vmem:[%s5 + $0xc] sm:$0xf]
    %v150 = vld [vmem:[%s6] sm:$0x1]
    %v151 = vld [vmem:[%s7] sm:$0xf]
    %v152 = vld [vmem:[%s7 + $0x4] sm:$0xf]
    %v153 = vld [vmem:[%s7 + $0x8] sm:$0xf]
    %v154 = vld [vmem:[%s7 + $0xc] sm:$0xf]
    %v155 = vld [vmem:[%s7 + $0x10] sm:$0xf]
    %v156 = vld [vmem:[%s7 + $0x14] sm:$0xf]
    %v157 = vld [vmem:[%s7 + $0x18] sm:$0xf]
    %v158 = vld [vmem:[%s7 + $0x1c] sm:$0xf]
    %v159 = vld [vmem:[%s7 + $0x20] sm:$0xf]
    %v160 = vld [vmem:[%s7 + $0x24] sm:$0xf]
    %v161 = vld [vmem:[%s7 + $0x28] sm:$0xf]
    %v162 = vld [vmem:[%s7 + $0x2c] sm:$0xf]
    %v163 = vld [vmem:[%s7 + $0x30] sm:$0xf]
    %v164 = vld [vmem:[%s7 + $0x34] sm:$0xf]
    %v165 = vld [vmem:[%s7 + $0x38] sm:$0xf]
    %v166 = vld [vmem:[%s7 + $0x3c] sm:$0xf]
    %v167 = vld [vmem:[%s8] sm:$0x1]
    %v168 = vpack.c.bf16 %v145, %v145
    %v170 = vlaneseq
    %v171 = vshrl.u32 %v170, 7
    %v172 = vsub.s32 0, %v171
    %v173 = vrot.slane %v150, %v172
    %v179 = vunpack.c.l.b16 %v146
    %v180 = vunpack.c.l.b16 %v147
    %v181 = vunpack.c.l.b16 %v148
    %v182 = vunpack.c.l.b16 %v149
    %v183 = vpack.c.b16 %v180, %v179
    %v184 = vpack.c.b16 %v182, %v181
    %v188 = vsel %vm117, %v168, 0
    %190 = vmatprep.subr.bf16.mxu0 0
    %191 = vmatpush1.bf16.msra.mxu0 0
    %192 = vmatprep.subr.bf16.mxu0 0
    %193 = vmatpush1.bf16.msra.mxu0 0
    %194 = vmatprep.subr.bf16.mxu0 0
    %195 = vmatpush1.bf16.msra.mxu0 0
    %196 = vmatprep.subr.bf16.mxu0 0
    %197 = vmatpush1.bf16.msra.mxu0 0
    %198 = vmatprep.subr.bf16.mxu0 0
    %199 = vmatpush1.bf16.msra.mxu0 0
    %200 = vmatprep.subr.bf16.mxu0 0
    %201 = vmatpush1.bf16.msra.mxu0 0
    %202 = vmatprep.subr.bf16.mxu0 0
    %203 = vmatpush1.bf16.msra.mxu0 %v184
    %204 = vmatprep.subr.bf16.mxu0 0
    %205 = vmatpush1.bf16.msra.mxu0 %v183
    %206 = vmatprep.subr.bf16.mxu0 0
    %207 = vmatpush2.bf16.msra.mxu0 0
    %208 = vmatprep.subr.bf16.mxu0 0
    %209 = vmatpush2.bf16.msra.mxu0 0
    %210 = vmatprep.subr.bf16.mxu0 0
    %211 = vmatpush2.bf16.msra.mxu0 0
    %212 = vmatprep.subr.bf16.mxu0 0
    %213 = vmatpush2.bf16.msra.mxu0 0
    %214 = vmatprep.subr.bf16.mxu0 0
    %215 = vmatpush2.bf16.msra.mxu0 0
    %216 = vmatprep.subr.bf16.mxu0 0
    %217 = vmatpush2.bf16.msra.mxu0 0
    %218 = vmatprep.subr.bf16.mxu0 0
    %219 = vmatpush2.bf16.msra.mxu0 0
    %220 = vmatprep.subr.bf16.mxu0 0
    %221 = vmatpush2.bf16.msra.mxu0 0
    %222 = vmatprep.mubr.bf16.mxu0 0
    %223 = vmatmul.mubr.bf16.gmra.mxu0 %v188
    %v224 = vpop.f32.mrf.mxu0
    %v225 = vadd.f32 %v173, %v224
    %v226 = vpop.f32.mrf.mxu0
    %v227 = vpop.f32.mrf.mxu0
    %v228 = vpop.f32.mrf.mxu0
    %229 = vdwg.mxu0
    %v230 = vmul.f32 %v225, %v225
    %v231 = vmul.f32 %v225, %v230
    %v232 = vmul.f32 %v231, 0.044715
    %v233 = vadd.f32 %v225, %v232
    %v234 = vmul.f32 %v233, 0.7978846
    %v235 = vtanh.pop %v234
    %v236 = vadd.f32 %v235, 1.0
    %v237 = vmul.f32 %v236, 0.5
    %v238 = vmul.f32 %v225, %v237
    %v239 = vpack.c.bf16 %v238, %v238
    %v241 = vlaneseq
    %v242 = vshrl.u32 %v241, 7
    %v243 = vsub.s32 0, %v242
    %v244 = vrot.slane %v167, %v243
    %v262 = vunpack.c.l.b16 %v151
    %v263 = vunpack.c.l.b16 %v152
    %v264 = vunpack.c.l.b16 %v153
    %v265 = vunpack.c.l.b16 %v154
    %v266 = vunpack.c.l.b16 %v155
    %v267 = vunpack.c.l.b16 %v156
    %v268 = vunpack.c.l.b16 %v157
    %v269 = vunpack.c.l.b16 %v158
    %v270 = vunpack.c.l.b16 %v159
    %v271 = vunpack.c.l.b16 %v160
    %v272 = vunpack.c.l.b16 %v161
    %v273 = vunpack.c.l.b16 %v162
    %v274 = vunpack.c.l.b16 %v163
    %v275 = vunpack.c.l.b16 %v164
    %v276 = vunpack.c.l.b16 %v165
    %v277 = vunpack.c.l.b16 %v166
    %v278 = vpack.c.b16 %v263, %v262
    %v279 = vpack.c.b16 %v265, %v264
    %v280 = vpack.c.b16 %v267, %v266
    %v281 = vpack.c.b16 %v269, %v268
    %v282 = vpack.c.b16 %v271, %v270
    %v283 = vpack.c.b16 %v273, %v272
    %v284 = vpack.c.b16 %v275, %v274
    %v285 = vpack.c.b16 %v277, %v276
    %294 = vmatprep.subr.bf16.mxu0 0
    %295 = vmatpush1.bf16.msra.mxu0 %v285
    %296 = vmatprep.subr.bf16.mxu0 0
    %297 = vmatpush1.bf16.msra.mxu0 %v284
    %298 = vmatprep.subr.bf16.mxu0 0
    %299 = vmatpush1.bf16.msra.mxu0 %v283
    %300 = vmatprep.subr.bf16.mxu0 0
    %301 = vmatpush1.bf16.msra.mxu0 %v282
    %302 = vmatprep.subr.bf16.mxu0 0
    %303 = vmatpush1.bf16.msra.mxu0 %v281
    %304 = vmatprep.subr.bf16.mxu0 0
    %305 = vmatpush1.bf16.msra.mxu0 %v280
    %306 = vmatprep.subr.bf16.mxu0 0
    %307 = vmatpush1.bf16.msra.mxu0 %v279
    %308 = vmatprep.subr.bf16.mxu0 0
    %309 = vmatpush1.bf16.msra.mxu0 %v278
    %310 = vmatprep.subr.bf16.mxu0 0
    %311 = vmatpush2.bf16.msra.mxu0 0
    %312 = vmatprep.subr.bf16.mxu0 0
    %313 = vmatpush2.bf16.msra.mxu0 0
    %314 = vmatprep.subr.bf16.mxu0 0
    %315 = vmatpush2.bf16.msra.mxu0 0
    %316 = vmatprep.subr.bf16.mxu0 0
    %317 = vmatpush2.bf16.msra.mxu0 0
    %318 = vmatprep.subr.bf16.mxu0 0
    %319 = vmatpush2.bf16.msra.mxu0 0
    %320 = vmatprep.subr.bf16.mxu0 0
    %321 = vmatpush2.bf16.msra.mxu0 0
    %322 = vmatprep.subr.bf16.mxu0 0
    %323 = vmatpush2.bf16.msra.mxu0 0
    %324 = vmatprep.subr.bf16.mxu0 0
    %325 = vmatpush2.bf16.msra.mxu0 0
    %326 = vmatprep.mubr.bf16.mxu0 0
    %327 = vmatmul.mubr.bf16.gmra.mxu0 %v239
    %v328 = vpop.f32.mrf.mxu0
    %v329 = vadd.f32 %v244, %v328
    %v330 = vpop.f32.mrf.mxu0
    %v331 = vpop.f32.mrf.mxu0
    %v332 = vpop.f32.mrf.mxu0
    %333 = vdwg.mxu0
    %v334 = vadd.f32 %v110, %v329
    %v335 = vld [vmem:[%s9] sm:$0x1]
    %v336 = vld [vmem:[%s10] sm:$0x1]
    %v337 = vsel %vm117, %v334, 0.0
    %338 = vadd.xlane.f32.xlu0 %v337
    %v339 = vpop.xlane.xlu0 %338
    %v340 = vmul.f32 %v339, %v121
    %v341 = vsub.f32 %v334, %v340
    %v342 = vmul.f32 %v341, %v341
    %v343 = vsel %vm117, %v342, 0.0
    %344 = vadd.xlane.f32.xlu0 %v343
    %v345 = vpop.xlane.xlu0 %344
    %v346 = vmul.f32 %v345, %v121
    %v347 = vadd.f32 %v346, 1e-05
    %v348 = vrsqrt.pop %v347
    %v349 = vmul.f32 %v341, %v348
    %v351 = vlaneseq
    %v352 = vshrl.u32 %v351, 7
    %v353 = vsub.s32 0, %v352
    %v354 = vrot.slane %v335, %v353
    %v356 = vmul.f32 %v349, %v354
    %v358 = vlaneseq
    %v359 = vshrl.u32 %v358, 7
    %v360 = vsub.s32 0, %v359
    %v361 = vrot.slane %v336, %v360
    %v363 = vadd.f32 %v356, %v361
    %v364 = vld [vmem:[%s11] sm:$0xf]
    %v365 = vld [vmem:[%s11 + $0x4] sm:$0xf]
    %v366 = vld [vmem:[%s11 + $0x8] sm:$0xf]
    %v367 = vld [vmem:[%s11 + $0xc] sm:$0xf]
    %v368 = vld [vmem:[%s12] sm:$0x1]
    %v369 = vld [vmem:[%s13] sm:$0xf]
    %v370 = vld [vmem:[%s13 + $0x4] sm:$0xf]
    %v371 = vld [vmem:[%s13 + $0x8] sm:$0xf]
    %v372 = vld [vmem:[%s13 + $0xc] sm:$0xf]
    %v373 = vld [vmem:[%s13 + $0x10] sm:$0xf]
    %v374 = vld [vmem:[%s13 + $0x14] sm:$0xf]
    %v375 = vld [vmem:[%s13 + $0x18] sm:$0xf]
    %v376 = vld [vmem:[%s13 + $0x1c] sm:$0xf]
    %v377 = vld [vmem:[%s13 + $0x20] sm:$0xf]
    %v378 = vld [vmem:[%s13 + $0x24] sm:$0xf]
    %v379 = vld [vmem:[%s13 + $0x28] sm:$0xf]
    %v380 = vld [vmem:[%s13 + $0x2c] sm:$0xf]
    %v381 = vld [vmem:[%s13 + $0x30] sm:$0xf]
    %v382 = vld [vmem:[%s13 + $0x34] sm:$0xf]
    %v383 = vld [vmem:[%s13 + $0x38] sm:$0xf]
    %v384 = vld [vmem:[%s13 + $0x3c] sm:$0xf]
    %v385 = vld [vmem:[%s14] sm:$0x1]
    %v386 = vpack.c.bf16 %v363, %v363
    %v388 = vlaneseq
    %v389 = vshrl.u32 %v388, 7
    %v390 = vsub.s32 0, %v389
    %v391 = vrot.slane %v368, %v390
    %v397 = vunpack.c.l.b16 %v364
    %v398 = vunpack.c.l.b16 %v365
    %v399 = vunpack.c.l.b16 %v366
    %v400 = vunpack.c.l.b16 %v367
    %v401 = vpack.c.b16 %v398, %v397
    %v402 = vpack.c.b16 %v400, %v399
    %v406 = vsel %vm117, %v386, 0
    %408 = vmatprep.subr.bf16.mxu0 0
    %409 = vmatpush1.bf16.msra.mxu0 0
    %410 = vmatprep.subr.bf16.mxu0 0
    %411 = vmatpush1.bf16.msra.mxu0 0
    %412 = vmatprep.subr.bf16.mxu0 0
    %413 = vmatpush1.bf16.msra.mxu0 0
    %414 = vmatprep.subr.bf16.mxu0 0
    %415 = vmatpush1.bf16.msra.mxu0 0
    %416 = vmatprep.subr.bf16.mxu0 0
    %417 = vmatpush1.bf16.msra.mxu0 0
    %418 = vmatprep.subr.bf16.mxu0 0
    %419 = vmatpush1.bf16.msra.mxu0 0
    %420 = vmatprep.subr.bf16.mxu0 0
    %421 = vmatpush1.bf16.msra.mxu0 %v402
    %422 = vmatprep.subr.bf16.mxu0 0
    %423 = vmatpush1.bf16.msra.mxu0 %v401
    %424 = vmatprep.subr.bf16.mxu0 0
    %425 = vmatpush2.bf16.msra.mxu0 0
    %426 = vmatprep.subr.bf16.mxu0 0
    %427 = vmatpush2.bf16.msra.mxu0 0
    %428 = vmatprep.subr.bf16.mxu0 0
    %429 = vmatpush2.bf16.msra.mxu0 0
    %430 = vmatprep.subr.bf16.mxu0 0
    %431 = vmatpush2.bf16.msra.mxu0 0
    %432 = vmatprep.subr.bf16.mxu0 0
    %433 = vmatpush2.bf16.msra.mxu0 0
    %434 = vmatprep.subr.bf16.mxu0 0
    %435 = vmatpush2.bf16.msra.mxu0 0
    %436 = vmatprep.subr.bf16.mxu0 0
    %437 = vmatpush2.bf16.msra.mxu0 0
    %438 = vmatprep.subr.bf16.mxu0 0
    %439 = vmatpush2.bf16.msra.mxu0 0
    %440 = vmatprep.mubr.bf16.mxu0 0
    %441 = vmatmul.mubr.bf16.gmra.mxu0 %v406
    %v442 = vpop.f32.mrf.mxu0
    %v443 = vadd.f32 %v391, %v442
    %v444 = vpop.f32.mrf.mxu0
    %v445 = vpop.f32.mrf.mxu0
    %v446 = vpop.f32.mrf.mxu0
    %447 = vdwg.mxu0
    %v448 = vmul.f32 %v443, %v443
    %v449 = vmul.f32 %v443, %v448
    %v450 = vmul.f32 %v449, 0.044715
    %v451 = vadd.f32 %v443, %v450
    %v452 = vmul.f32 %v451, 0.7978846
    %v453 = vtanh.pop %v452
    %v454 = vadd.f32 %v453, 1.0
    %v455 = vmul.f32 %v454, 0.5
    %v456 = vmul.f32 %v443, %v455
    %v457 = vpack.c.bf16 %v456, %v456
    %v459 = vlaneseq
    %v460 = vshrl.u32 %v459, 7
    %v461 = vsub.s32 0, %v460
    %v462 = vrot.slane %v385, %v461
    %v480 = vunpack.c.l.b16 %v369
    %v481 = vunpack.c.l.b16 %v370
    %v482 = vunpack.c.l.b16 %v371
    %v483 = vunpack.c.l.b16 %v372
    %v484 = vunpack.c.l.b16 %v373
    %v485 = vunpack.c.l.b16 %v374
    %v486 = vunpack.c.l.b16 %v375
    %v487 = vunpack.c.l.b16 %v376
    %v488 = vunpack.c.l.b16 %v377
    %v489 = vunpack.c.l.b16 %v378
    %v490 = vunpack.c.l.b16 %v379
    %v491 = vunpack.c.l.b16 %v380
    %v492 = vunpack.c.l.b16 %v381
    %v493 = vunpack.c.l.b16 %v382
    %v494 = vunpack.c.l.b16 %v383
    %v495 = vunpack.c.l.b16 %v384
    %v496 = vpack.c.b16 %v481, %v480
    %v497 = vpack.c.b16 %v483, %v482
    %v498 = vpack.c.b16 %v485, %v484
    %v499 = vpack.c.b16 %v487, %v486
    %v500 = vpack.c.b16 %v489, %v488
    %v501 = vpack.c.b16 %v491, %v490
    %v502 = vpack.c.b16 %v493, %v492
    %v503 = vpack.c.b16 %v495, %v494
    %512 = vmatprep.subr.bf16.mxu0 0
    %513 = vmatpush1.bf16.msra.mxu0 %v503
    %514 = vmatprep.subr.bf16.mxu0 0
    %515 = vmatpush1.bf16.msra.mxu0 %v502
    %516 = vmatprep.subr.bf16.mxu0 0
    %517 = vmatpush1.bf16.msra.mxu0 %v501
    %518 = vmatprep.subr.bf16.mxu0 0
    %519 = vmatpush1.bf16.msra.mxu0 %v500
    %520 = vmatprep.subr.bf16.mxu0 0
    %521 = vmatpush1.bf16.msra.mxu0 %v499
    %522 = vmatprep.subr.bf16.mxu0 0
    %523 = vmatpush1.bf16.msra.mxu0 %v498
    %524 = vmatprep.subr.bf16.mxu0 0
    %525 = vmatpush1.bf16.msra.mxu0 %v497
    %526 = vmatprep.subr.bf16.mxu0 0
    %527 = vmatpush1.bf16.msra.mxu0 %v496
    %528 = vmatprep.subr.bf16.mxu0 0
    %529 = vmatpush2.bf16.msra.mxu0 0
    %530 = vmatprep.subr.bf16.mxu0 0
    %531 = vmatpush2.bf16.msra.mxu0 0
    %532 = vmatprep.subr.bf16.mxu0 0
    %533 = vmatpush2.bf16.msra.mxu0 0
    %534 = vmatprep.subr.bf16.mxu0 0
    %535 = vmatpush2.bf16.msra.mxu0 0
    %536 = vmatprep.subr.bf16.mxu0 0
    %537 = vmatpush2.bf16.msra.mxu0 0
    %538 = vmatprep.subr.bf16.mxu0 0
    %539 = vmatpush2.bf16.msra.mxu0 0
    %540 = vmatprep.subr.bf16.mxu0 0
    %541 = vmatpush2.bf16.msra.mxu0 0
    %542 = vmatprep.subr.bf16.mxu0 0
    %543 = vmatpush2.bf16.msra.mxu0 0
    %544 = vmatprep.mubr.bf16.mxu0 0
    %545 = vmatmul.mubr.bf16.gmra.mxu0 %v457
    %v546 = vpop.f32.mrf.mxu0
    %v547 = vadd.f32 %v462, %v546
    %v548 = vpop.f32.mrf.mxu0
    %v549 = vpop.f32.mrf.mxu0
    %v550 = vpop.f32.mrf.mxu0
    %551 = vdwg.mxu0
    %v552 = vadd.f32 %v334, %v547
    %s553 = scalar_lea.vmem %s3, 1
    %v554 = vld [vmem:[%s553] sm:$0x1]
    %s555 = scalar_lea.vmem %s4, 1
    %v556 = vld [vmem:[%s555] sm:$0x1]
    %v557 = vsel %vm117, %v552, 0.0
    %558 = vadd.xlane.f32.xlu0 %v557
    %v559 = vpop.xlane.xlu0 %558
    %v560 = vmul.f32 %v559, %v121
    %v561 = vsub.f32 %v552, %v560
    %v562 = vmul.f32 %v561, %v561
    %v563 = vsel %vm117, %v562, 0.0
    %564 = vadd.xlane.f32.xlu0 %v563
    %v565 = vpop.xlane.xlu0 %564
    %v566 = vmul.f32 %v565, %v121
    %v567 = vadd.f32 %v566, 1e-05
    %v568 = vrsqrt.pop %v567
    %v569 = vmul.f32 %v561, %v568
    %v571 = vlaneseq
    %v572 = vshrl.u32 %v571, 7
    %v573 = vsub.s32 0, %v572
    %v574 = vrot.slane %v554, %v573
    %v576 = vmul.f32 %v569, %v574
    %v578 = vlaneseq
    %v579 = vshrl.u32 %v578, 7
    %v580 = vsub.s32 0, %v579
    %v581 = vrot.slane %v556, %v580
    %v583 = vadd.f32 %v576, %v581
    %s584 = scalar_lea.vmem %s5, 16
    %v585 = vld [vmem:[%s584] sm:$0xf]
    %v586 = vld [vmem:[%s584 + $0x4] sm:$0xf]
    %v587 = vld [vmem:[%s584 + $0x8] sm:$0xf]
    %v588 = vld [vmem:[%s584 + $0xc] sm:$0xf]
    %s589 = scalar_lea.vmem %s6, 1
    %v590 = vld [vmem:[%s589] sm:$0x1]
    %s591 = scalar_lea.vmem %s7, 64
    %v592 = vld [vmem:[%s591] sm:$0xf]
    %v593 = vld [vmem:[%s591 + $0x4] sm:$0xf]
    %v594 = vld [vmem:[%s591 + $0x8] sm:$0xf]
    %v595 = vld [vmem:[%s591 + $0xc] sm:$0xf]
    %v596 = vld [vmem:[%s591 + $0x10] sm:$0xf]
    %v597 = vld [vmem:[%s591 + $0x14] sm:$0xf]
    %v598 = vld [vmem:[%s591 + $0x18] sm:$0xf]
    %v599 = vld [vmem:[%s591 + $0x1c] sm:$0xf]
    %v600 = vld [vmem:[%s591 + $0x20] sm:$0xf]
    %v601 = vld [vmem:[%s591 + $0x24] sm:$0xf]
    %v602 = vld [vmem:[%s591 + $0x28] sm:$0xf]
    %v603 = vld [vmem:[%s591 + $0x2c] sm:$0xf]
    %v604 = vld [vmem:[%s591 + $0x30] sm:$0xf]
    %v605 = vld [vmem:[%s591 + $0x34] sm:$0xf]
    %v606 = vld [vmem:[%s591 + $0x38] sm:$0xf]
    %v607 = vld [vmem:[%s591 + $0x3c] sm:$0xf]
    %s608 = scalar_lea.vmem %s8, 1
    %v609 = vld [vmem:[%s608] sm:$0x1]
    %v610 = vpack.c.bf16 %v583, %v583
    %v612 = vlaneseq
    %v613 = vshrl.u32 %v612, 7
    %v614 = vsub.s32 0, %v613
    %v615 = vrot.slane %v590, %v614
    %v621 = vunpack.c.l.b16 %v585
    %v622 = vunpack.c.l.b16 %v586
    %v623 = vunpack.c.l.b16 %v587
    %v624 = vunpack.c.l.b16 %v588
    %v625 = vpack.c.b16 %v622, %v621
    %v626 = vpack.c.b16 %v624, %v623
    %v630 = vsel %vm117, %v610, 0
    %632 = vmatprep.subr.bf16.mxu0 0
    %633 = vmatpush1.bf16.msra.mxu0 0
    %634 = vmatprep.subr.bf16.mxu0 0
    %635 = vmatpush1.bf16.msra.mxu0 0
    %636 = vmatprep.subr.bf16.mxu0 0
    %637 = vmatpush1.bf16.msra.mxu0 0
    %638 = vmatprep.subr.bf16.mxu0 0
    %639 = vmatpush1.bf16.msra.mxu0 0
    %640 = vmatprep.subr.bf16.mxu0 0
    %641 = vmatpush1.bf16.msra.mxu0 0
    %642 = vmatprep.subr.bf16.mxu0 0
    %643 = vmatpush1.bf16.msra.mxu0 0
    %644 = vmatprep.subr.bf16.mxu0 0
    %645 = vmatpush1.bf16.msra.mxu0 %v626
    %646 = vmatprep.subr.bf16.mxu0 0
    %647 = vmatpush1.bf16.msra.mxu0 %v625
    %648 = vmatprep.subr.bf16.mxu0 0
    %649 = vmatpush2.bf16.msra.mxu0 0
    %650 = vmatprep.subr.bf16.mxu0 0
    %651 = vmatpush2.bf16.msra.mxu0 0
    %652 = vmatprep.subr.bf16.mxu0 0
    %653 = vmatpush2.bf16.msra.mxu0 0
    %654 = vmatprep.subr.bf16.mxu0 0
    %655 = vmatpush2.bf16.msra.mxu0 0
    %656 = vmatprep.subr.bf16.mxu0 0
    %657 = vmatpush2.bf16.msra.mxu0 0
    %658 = vmatprep.subr.bf16.mxu0 0
    %659 = vmatpush2.bf16.msra.mxu0 0
    %660 = vmatprep.subr.bf16.mxu0 0
    %661 = vmatpush2.bf16.msra.mxu0 0
    %662 = vmatprep.subr.bf16.mxu0 0
    %663 = vmatpush2.bf16.msra.mxu0 0
    %664 = vmatprep.mubr.bf16.mxu0 0
    %665 = vmatmul.mubr.bf16.gmra.mxu0 %v630
    %v666 = vpop.f32.mrf.mxu0
    %v667 = vadd.f32 %v615, %v666
    %v668 = vpop.f32.mrf.mxu0
    %v669 = vpop.f32.mrf.mxu0
    %v670 = vpop.f32.mrf.mxu0
    %671 = vdwg.mxu0
    %v672 = vmul.f32 %v667, %v667
    %v673 = vmul.f32 %v667, %v672
    %v674 = vmul.f32 %v673, 0.044715
    %v675 = vadd.f32 %v667, %v674
    %v676 = vmul.f32 %v675, 0.7978846
    %v677 = vtanh.pop %v676
    %v678 = vadd.f32 %v677, 1.0
    %v679 = vmul.f32 %v678, 0.5
    %v680 = vmul.f32 %v667, %v679
    %v681 = vpack.c.bf16 %v680, %v680
    %v683 = vlaneseq
    %v684 = vshrl.u32 %v683, 7
    %v685 = vsub.s32 0, %v684
    %v686 = vrot.slane %v609, %v685
    %v704 = vunpack.c.l.b16 %v592
    %v705 = vunpack.c.l.b16 %v593
    %v706 = vunpack.c.l.b16 %v594
    %v707 = vunpack.c.l.b16 %v595
    %v708 = vunpack.c.l.b16 %v596
    %v709 = vunpack.c.l.b16 %v597
    %v710 = vunpack.c.l.b16 %v598
    %v711 = vunpack.c.l.b16 %v599
    %v712 = vunpack.c.l.b16 %v600
    %v713 = vunpack.c.l.b16 %v601
    %v714 = vunpack.c.l.b16 %v602
    %v715 = vunpack.c.l.b16 %v603
    %v716 = vunpack.c.l.b16 %v604
    %v717 = vunpack.c.l.b16 %v605
    %v718 = vunpack.c.l.b16 %v606
    %v719 = vunpack.c.l.b16 %v607
    %v720 = vpack.c.b16 %v705, %v704
    %v721 = vpack.c.b16 %v707, %v706
    %v722 = vpack.c.b16 %v709, %v708
    %v723 = vpack.c.b16 %v711, %v710
    %v724 = vpack.c.b16 %v713, %v712
    %v725 = vpack.c.b16 %v715, %v714
    %v726 = vpack.c.b16 %v717, %v716
    %v727 = vpack.c.b16 %v719, %v718
    %736 = vmatprep.subr.bf16.mxu0 0
    %737 = vmatpush1.bf16.msra.mxu0 %v727
    %738 = vmatprep.subr.bf16.mxu0 0
    %739 = vmatpush1.bf16.msra.mxu0 %v726
    %740 = vmatprep.subr.bf16.mxu0 0
    %741 = vmatpush1.bf16.msra.mxu0 %v725
    %742 = vmatprep.subr.bf16.mxu0 0
    %743 = vmatpush1.bf16.msra.mxu0 %v724
    %744 = vmatprep.subr.bf16.mxu0 0
    %745 = vmatpush1.bf16.msra.mxu0 %v723
    %746 = vmatprep.subr.bf16.mxu0 0
    %747 = vmatpush1.bf16.msra.mxu0 %v722
    %748 = vmatprep.subr.bf16.mxu0 0
    %749 = vmatpush1.bf16.msra.mxu0 %v721
    %750 = vmatprep.subr.bf16.mxu0 0
    %751 = vmatpush1.bf16.msra.mxu0 %v720
    %752 = vmatprep.subr.bf16.mxu0 0
    %753 = vmatpush2.bf16.msra.mxu0 0
    %754 = vmatprep.subr.bf16.mxu0 0
    %755 = vmatpush2.bf16.msra.mxu0 0
    %756 = vmatprep.subr.bf16.mxu0 0
    %757 = vmatpush2.bf16.msra.mxu0 0
    %758 = vmatprep.subr.bf16.mxu0 0
    %759 = vmatpush2.bf16.msra.mxu0 0
    %760 = vmatprep.subr.bf16.mxu0 0
    %761 = vmatpush2.bf16.msra.mxu0 0
    %762 = vmatprep.subr.bf16.mxu0 0
    %763 = vmatpush2.bf16.msra.mxu0 0
    %764 = vmatprep.subr.bf16.mxu0 0
    %765 = vmatpush2.bf16.msra.mxu0 0
    %766 = vmatprep.subr.bf16.mxu0 0
    %767 = vmatpush2.bf16.msra.mxu0 0
    %768 = vmatprep.mubr.bf16.mxu0 0
    %769 = vmatmul.mubr.bf16.gmra.mxu0 %v681
    %v770 = vpop.f32.mrf.mxu0
    %v771 = vadd.f32 %v686, %v770
    %v772 = vpop.f32.mrf.mxu0
    %v773 = vpop.f32.mrf.mxu0
    %v774 = vpop.f32.mrf.mxu0
    %775 = vdwg.mxu0
    %v776 = vadd.f32 %v552, %v771
    %s777 = scalar_lea.vmem %s9, 1
    %v778 = vld [vmem:[%s777] sm:$0x1]
    %s779 = scalar_lea.vmem %s10, 1
    %v780 = vld [vmem:[%s779] sm:$0x1]
    %v781 = vsel %vm117, %v776, 0.0
    %782 = vadd.xlane.f32.xlu0 %v781
    %v783 = vpop.xlane.xlu0 %782
    %v784 = vmul.f32 %v783, %v121
    %v785 = vsub.f32 %v776, %v784
    %v786 = vmul.f32 %v785, %v785
    %v787 = vsel %vm117, %v786, 0.0
    %788 = vadd.xlane.f32.xlu0 %v787
    %v789 = vpop.xlane.xlu0 %788
    %v790 = vmul.f32 %v789, %v121
    %v791 = vadd.f32 %v790, 1e-05
    %v792 = vrsqrt.pop %v791
    %v793 = vmul.f32 %v785, %v792
    %v795 = vlaneseq
    %v796 = vshrl.u32 %v795, 7
    %v797 = vsub.s32 0, %v796
    %v798 = vrot.slane %v778, %v797
    %v800 = vmul.f32 %v793, %v798
    %v802 = vlaneseq
    %v803 = vshrl.u32 %v802, 7
    %v804 = vsub.s32 0, %v803
    %v805 = vrot.slane %v780, %v804
    %v807 = vadd.f32 %v800, %v805
    %s808 = scalar_lea.vmem %s11, 16
    %v809 = vld [vmem:[%s808] sm:$0xf]
    %v810 = vld [vmem:[%s808 + $0x4] sm:$0xf]
    %v811 = vld [vmem:[%s808 + $0x8] sm:$0xf]
    %v812 = vld [vmem:[%s808 + $0xc] sm:$0xf]
    %s813 = scalar_lea.vmem %s12, 1
    %v814 = vld [vmem:[%s813] sm:$0x1]
    %s815 = scalar_lea.vmem %s13, 64
    %v816 = vld [vmem:[%s815] sm:$0xf]
    %v817 = vld [vmem:[%s815 + $0x4] sm:$0xf]
    %v818 = vld [vmem:[%s815 + $0x8] sm:$0xf]
    %v819 = vld [vmem:[%s815 + $0xc] sm:$0xf]
    %v820 = vld [vmem:[%s815 + $0x10] sm:$0xf]
    %v821 = vld [vmem:[%s815 + $0x14] sm:$0xf]
    %v822 = vld [vmem:[%s815 + $0x18] sm:$0xf]
    %v823 = vld [vmem:[%s815 + $0x1c] sm:$0xf]
    %v824 = vld [vmem:[%s815 + $0x20] sm:$0xf]
    %v825 = vld [vmem:[%s815 + $0x24] sm:$0xf]
    %v826 = vld [vmem:[%s815 + $0x28] sm:$0xf]
    %v827 = vld [vmem:[%s815 + $0x2c] sm:$0xf]
    %v828 = vld [vmem:[%s815 + $0x30] sm:$0xf]
    %v829 = vld [vmem:[%s815 + $0x34] sm:$0xf]
    %v830 = vld [vmem:[%s815 + $0x38] sm:$0xf]
    %v831 = vld [vmem:[%s815 + $0x3c] sm:$0xf]
    %s832 = scalar_lea.vmem %s14, 1
    %v833 = vld [vmem:[%s832] sm:$0x1]
    %v834 = vpack.c.bf16 %v807, %v807
    %v836 = vlaneseq
    %v837 = vshrl.u32 %v836, 7
    %v838 = vsub.s32 0, %v837
    %v839 = vrot.slane %v814, %v838
    %v845 = vunpack.c.l.b16 %v809
    %v846 = vunpack.c.l.b16 %v810
    %v847 = vunpack.c.l.b16 %v811
    %v848 = vunpack.c.l.b16 %v812
    %v849 = vpack.c.b16 %v846, %v845
    %v850 = vpack.c.b16 %v848, %v847
    %v854 = vsel %vm117, %v834, 0
    %856 = vmatprep.subr.bf16.mxu0 0
    %857 = vmatpush1.bf16.msra.mxu0 0
    %858 = vmatprep.subr.bf16.mxu0 0
    %859 = vmatpush1.bf16.msra.mxu0 0
    %860 = vmatprep.subr.bf16.mxu0 0
    %861 = vmatpush1.bf16.msra.mxu0 0
    %862 = vmatprep.subr.bf16.mxu0 0
    %863 = vmatpush1.bf16.msra.mxu0 0
    %864 = vmatprep.subr.bf16.mxu0 0
    %865 = vmatpush1.bf16.msra.mxu0 0
    %866 = vmatprep.subr.bf16.mxu0 0
    %867 = vmatpush1.bf16.msra.mxu0 0
    %868 = vmatprep.subr.bf16.mxu0 0
    %869 = vmatpush1.bf16.msra.mxu0 %v850
    %870 = vmatprep.subr.bf16.mxu0 0
    %871 = vmatpush1.bf16.msra.mxu0 %v849
    %872 = vmatprep.subr.bf16.mxu0 0
    %873 = vmatpush2.bf16.msra.mxu0 0
    %874 = vmatprep.subr.bf16.mxu0 0
    %875 = vmatpush2.bf16.msra.mxu0 0
    %876 = vmatprep.subr.bf16.mxu0 0
    %877 = vmatpush2.bf16.msra.mxu0 0
    %878 = vmatprep.subr.bf16.mxu0 0
    %879 = vmatpush2.bf16.msra.mxu0 0
    %880 = vmatprep.subr.bf16.mxu0 0
    %881 = vmatpush2.bf16.msra.mxu0 0
    %882 = vmatprep.subr.bf16.mxu0 0
    %883 = vmatpush2.bf16.msra.mxu0 0
    %884 = vmatprep.subr.bf16.mxu0 0
    %885 = vmatpush2.bf16.msra.mxu0 0
    %886 = vmatprep.subr.bf16.mxu0 0
    %887 = vmatpush2.bf16.msra.mxu0 0
    %888 = vmatprep.mubr.bf16.mxu0 0
    %889 = vmatmul.mubr.bf16.gmra.mxu0 %v854
    %v890 = vpop.f32.mrf.mxu0
    %v891 = vadd.f32 %v839, %v890
    %v892 = vpop.f32.mrf.mxu0
    %v893 = vpop.f32.mrf.mxu0
    %v894 = vpop.f32.mrf.mxu0
    %895 = vdwg.mxu0
    %v896 = vmul.f32 %v891, %v891
    %v897 = vmul.f32 %v891, %v896
    %v898 = vmul.f32 %v897, 0.044715
    %v899 = vadd.f32 %v891, %v898
    %v900 = vmul.f32 %v899, 0.7978846
    %v901 = vtanh.pop %v900
    %v902 = vadd.f32 %v901, 1.0
    %v903 = vmul.f32 %v902, 0.5
    %v904 = vmul.f32 %v891, %v903
    %v905 = vpack.c.bf16 %v904, %v904
    %v907 = vlaneseq
    %v908 = vshrl.u32 %v907, 7
    %v909 = vsub.s32 0, %v908
    %v910 = vrot.slane %v833, %v909
    %v928 = vunpack.c.l.b16 %v816
    %v929 = vunpack.c.l.b16 %v817
    %v930 = vunpack.c.l.b16 %v818
    %v931 = vunpack.c.l.b16 %v819
    %v932 = vunpack.c.l.b16 %v820
    %v933 = vunpack.c.l.b16 %v821
    %v934 = vunpack.c.l.b16 %v822
    %v935 = vunpack.c.l.b16 %v823
    %v936 = vunpack.c.l.b16 %v824
    %v937 = vunpack.c.l.b16 %v825
    %v938 = vunpack.c.l.b16 %v826
    %v939 = vunpack.c.l.b16 %v827
    %v940 = vunpack.c.l.b16 %v828
    %v941 = vunpack.c.l.b16 %v829
    %v942 = vunpack.c.l.b16 %v830
    %v943 = vunpack.c.l.b16 %v831
    %v944 = vpack.c.b16 %v929, %v928
    %v945 = vpack.c.b16 %v931, %v930
    %v946 = vpack.c.b16 %v933, %v932
    %v947 = vpack.c.b16 %v935, %v934
    %v948 = vpack.c.b16 %v937, %v936
    %v949 = vpack.c.b16 %v939, %v938
    %v950 = vpack.c.b16 %v941, %v940
    %v951 = vpack.c.b16 %v943, %v942
    %960 = vmatprep.subr.bf16.mxu0 0
    %961 = vmatpush1.bf16.msra.mxu0 %v951
    %962 = vmatprep.subr.bf16.mxu0 0
    %963 = vmatpush1.bf16.msra.mxu0 %v950
    %964 = vmatprep.subr.bf16.mxu0 0
    %965 = vmatpush1.bf16.msra.mxu0 %v949
    %966 = vmatprep.subr.bf16.mxu0 0
    %967 = vmatpush1.bf16.msra.mxu0 %v948
    %968 = vmatprep.subr.bf16.mxu0 0
    %969 = vmatpush1.bf16.msra.mxu0 %v947
    %970 = vmatprep.subr.bf16.mxu0 0
    %971 = vmatpush1.bf16.msra.mxu0 %v946
    %972 = vmatprep.subr.bf16.mxu0 0
    %973 = vmatpush1.bf16.msra.mxu0 %v945
    %974 = vmatprep.subr.bf16.mxu0 0
    %975 = vmatpush1.bf16.msra.mxu0 %v944
    %976 = vmatprep.subr.bf16.mxu0 0
    %977 = vmatpush2.bf16.msra.mxu0 0
    %978 = vmatprep.subr.bf16.mxu0 0
    %979 = vmatpush2.bf16.msra.mxu0 0
    %980 = vmatprep.subr.bf16.mxu0 0
    %981 = vmatpush2.bf16.msra.mxu0 0
    %982 = vmatprep.subr.bf16.mxu0 0
    %983 = vmatpush2.bf16.msra.mxu0 0
    %984 = vmatprep.subr.bf16.mxu0 0
    %985 = vmatpush2.bf16.msra.mxu0 0
    %986 = vmatprep.subr.bf16.mxu0 0
    %987 = vmatpush2.bf16.msra.mxu0 0
    %988 = vmatprep.subr.bf16.mxu0 0
    %989 = vmatpush2.bf16.msra.mxu0 0
    %990 = vmatprep.subr.bf16.mxu0 0
    %991 = vmatpush2.bf16.msra.mxu0 0
    %992 = vmatprep.mubr.bf16.mxu0 0
    %993 = vmatmul.mubr.bf16.gmra.mxu0 %v905
    %v994 = vpop.f32.mrf.mxu0
    %v995 = vadd.f32 %v910, %v994
    %v996 = vpop.f32.mrf.mxu0
    %v997 = vpop.f32.mrf.mxu0
    %v998 = vpop.f32.mrf.mxu0
    %999 = vdwg.mxu0
    %v1000 = vadd.f32 %v776, %v995
    %v1001 = vld [vmem:[%s15] sm:$0x1]
    %v1003 = vlaneseq
    %v1004 = vshrl.u32 %v1003, 7
    %v1005 = vsub.s32 0, %v1004
    %v1006 = vrot.slane %v1001, %v1005
    %v1008 = vmul.f32 %v1000, %v1006
    %v1009 = vsel %vm117, %v1008, 0.0
    %1010 = vadd.xlane.f32.xlu0 %v1009
    %v1011 = vpop.xlane.xlu0 %1010
    %v1013 = vlaneseq
    %v1014 = vand.u32 %v1013, 127
    %v1015 = vlaneseq
    %v1016 = vshrl.u32 %v1015, 7
    %v1017 = vsub.s32 %v1014, %v1016
    %v1018 = vrot.slane %v1011, %v1017
    %vm1020 = vcmask 57344
    %1021 = vst.msk [vmem:[#allocation2] sm:$0x1] %vm1020, %v1018
    // Predicated region
    $region66: #{tpu_custom_call.1} parent=1 // pred_check
      _
    $region67: #{tpu_custom_call.1} parent=1 // pred_check_branch
      %1023 = sbr.rel (0) target = $region69
    $region68: #{tpu_custom_call.1} parent=1 // pred_region
      %s1025 = ssub.s32 16, 16
      %1026 = vsyncadd [#allocation3], %s1025
      %s1028 = sshll.u32 [#allocation2], 4
      %s1029 = int_to_ptr.vmem [resolvable:$true] %s1028
      %1031 = dma.vmem_to_hbm [thread:$0]  %s1029, 16, %s16, [#allocation3]
    $region69: #{tpu_custom_call.1} parent=1 // pred_fallthru
      _
    // Predicated region
    $region70: #{tpu_custom_call.1} parent=1 // pred_check
      _
    $region71: #{tpu_custom_call.1} parent=1 // pred_check_branch
      %1033 = sbr.rel (0) target = $region73
    $region72: #{tpu_custom_call.1} parent=1 // pred_region
      %1034 = dma.done [#allocation3], 16
    $region73: #{tpu_custom_call.1} parent=1 // pred_fallthru
      _
    %1035 = vsyncpa [#allocation3], 1

</llo_original>
